<compile_context>
chip_gen: v5e
topology: v5e:2x2
jax: 0.10.0
libtpu: 0.0.40
codegen_flags: <defaults>
</compile_context>

<pallas_src>
from functools import reduce

import jax
import jax.numpy as jnp
from jax.experimental import pallas as pl
from jax.experimental.pallas import tpu as pltpu

HIDDEN = 512
LANE = 128
SUBLANE = 8


def _round_up(x, m):
    return ((x + m - 1) // m) * m


def _dqn_mlp_kernel(x_ref, w1_ref, b1_ref, w2_ref, b2_ref, w3_ref, b3_ref, o_ref):
    """Whole-network MLP forward for one batch tile (weights resident in VMEM)."""
    # Activations arrive as f32 straight from HBM; cast to bf16 in-kernel
    # (VPU) instead of a separate wrapper-side XLA pass over HBM.
    x = x_ref[...].astype(jnp.bfloat16)  # (TM, flat_dim)

    # Linear 1 + ReLU  (bf16 MXU inputs, f32 accumulation)
    h1 = jnp.dot(x, w1_ref[...], preferred_element_type=jnp.float32) + b1_ref[...]
    h1 = jnp.maximum(h1, 0.0).astype(jnp.bfloat16)

    # Linear 2 + ReLU
    h2 = jnp.dot(h1, w2_ref[...], preferred_element_type=jnp.float32) + b2_ref[...]
    h2 = jnp.maximum(h2, 0.0)  # keep f32 for the final layer

    # Linear 3 (Q-values, no activation) -- f32 weights for argmax stability.
    q = jnp.dot(h2, w3_ref[...], preferred_element_type=jnp.float32) + b3_ref[...]
    o_ref[...] = q.astype(o_ref.dtype)


def prepare_dqn_params(params):
    """One-time dtype cast + lane-dense zero-padding of the parameters."""
    w1, b1, w2, b2, w3, b3 = params
    flat_dim, hidden = w1.shape
    num_actions = w3.shape[1]
    n_pad = _round_up(num_actions, LANE)

    w1_p = w1.astype(jnp.bfloat16)                       # (flat_dim, 512)
    w2_p = w2.astype(jnp.bfloat16)                       # (512, 512)
    # Final layer stays f32 (tiny) -> better Q-value / argmax fidelity.
    w3_p = jnp.zeros((hidden, n_pad), jnp.float32).at[:, :num_actions].set(
        w3.astype(jnp.float32))
    b1_p = b1.astype(jnp.float32).reshape(1, hidden)
    b2_p = b2.astype(jnp.float32).reshape(1, hidden)
    b3_p = jnp.zeros((1, n_pad), jnp.float32).at[:, :num_actions].set(
        b3.astype(jnp.float32).reshape(1, num_actions))

    return {
        "w1": w1_p, "b1": b1_p, "w2": w2_p, "b2": b2_p, "w3": w3_p, "b3": b3_p,
        "flat_dim": flat_dim, "num_actions": num_actions,
    }


def _pick_tm(B):
    """Pick a batch tile: amortize per-step overhead, bound pad waste, keep
    >= 2 grid steps (both v7x TensorCores) when the batch allows it."""
    if B <= 128:
        # Single tile; 16-row alignment so bf16 intermediates are fully
        # packed vregs.  Partial-block masking handles B < tm.
        return max(16, _round_up(B, 16))
    best_tm, best_cost = 128, None
    for cand in (128, 256, 512, 1024):
        steps = -(-B // cand)
        padded_rows = steps * cand
        # Cost model: padded MXU row work + per-step pipeline overhead
        # (~0.35 us/step expressed in row-equivalents), plus a mild penalty
        # for a grid of length 1 (one v7x TensorCore would idle).
        cost = padded_rows + steps * 256
        if steps < 2:
            cost += 512
        if best_cost is None or cost < best_cost:
            best_tm, best_cost = cand, cost
    return best_tm


def dqn_forward(state, prepared, *, tm=None):
    """state: (B, C, H, W) float32 (NCHW).  Returns (B, num_actions) float32."""
    w1, b1, w2, b2, w3, b3 = (prepared[k] for k in ("w1", "b1", "w2", "b2", "w3", "b3"))
    flat_dim = prepared["flat_dim"]
    num_actions = prepared["num_actions"]
    hidden = w1.shape[1]
    n_pad = w3.shape[1]

    B = state.shape[0]
    # == torch.flatten(state, 1); contiguous reshape, no HBM copy, stays f32.
    x = state.reshape(B, flat_dim)

    if tm is None:
        tm = _pick_tm(B)
    grid = (pl.cdiv(B, tm),)

    out = pl.pallas_call(
        _dqn_mlp_kernel,
        out_shape=jax.ShapeDtypeStruct((B, n_pad), jnp.float32),
        grid=grid,
        in_specs=[
            pl.BlockSpec((tm, flat_dim), lambda i: (i, 0)),      # activations: tiled over batch
            pl.BlockSpec((flat_dim, hidden), lambda i: (0, 0)),  # weights/biases: VMEM-resident
            pl.BlockSpec((1, hidden), lambda i: (0, 0)),
            pl.BlockSpec((hidden, hidden), lambda i: (0, 0)),
            pl.BlockSpec((1, hidden), lambda i: (0, 0)),
            pl.BlockSpec((hidden, n_pad), lambda i: (0, 0)),
            pl.BlockSpec((1, n_pad), lambda i: (0, 0)),
        ],
        out_specs=pl.BlockSpec((tm, n_pad), lambda i: (i, 0)),
        compiler_params=pltpu.CompilerParams(
            dimension_semantics=("parallel",),
            vmem_limit_bytes=32 * 1024 * 1024,
        ),
    )(x, w1, b1, w2, b2, w3, b3)

    # Drop the lane padding on the action axis (batch axis is exact).
    return out[:, :num_actions]


def init_dqn_params(key, state_shape, num_actions, hidden=HIDDEN):
    """Deterministic synthetic parameter init (shapes match nn.Linear layers)."""
    flat_dim = reduce(lambda a, b: a * b, state_shape)
    k1, k2, k3, k4, k5, k6 = jax.random.split(key, 6)

    def uniform(k, shape, fan_in):
        bound = 1.0 / jnp.sqrt(jnp.float32(fan_in))
        return jax.random.uniform(k, shape, jnp.float32, -bound, bound)

    # Stored as (in, out); PyTorch Linear computes x @ W.T with W:(out,in),
    # so this is the transposed equivalent and gives identical math.
    w1 = uniform(k1, (flat_dim, hidden), flat_dim)
    b1 = uniform(k2, (1, hidden), flat_dim)
    w2 = uniform(k3, (hidden, hidden), hidden)
    b2 = uniform(k4, (1, hidden), hidden)
    w3 = uniform(k5, (hidden, num_actions), hidden)
    b3 = uniform(k6, (1, num_actions), hidden)
    return (w1, b1, w2, b2, w3, b3)


def dqn_reference(state, params):
    """Pure-JAX f32 reference of the same forward pass (PyTorch semantics)."""
    w1, b1, w2, b2, w3, b3 = params
    x = state.reshape(state.shape[0], -1)
    h1 = jnp.maximum(x @ w1 + b1, 0.0)
    h2 = jnp.maximum(h1 @ w2 + b2, 0.0)
    return h2 @ w3 + b3


if __name__ == "__main__":
    key = jax.random.PRNGKey(0)
    k_param, k_state = jax.random.split(key)

    # Small shapes consistent with the module: state_shape=(C,H,W), batch=2.
    state_shape = (4, 8, 8)          # flattened_state_shape = 256
    num_actions = 32
    batch = 2

    params = init_dqn_params(k_param, state_shape, num_actions)
    prepared = prepare_dqn_params(params)
    state = jax.random.normal(k_state, (batch,) + state_shape, dtype=jnp.float32)

    q = dqn_forward(state, prepared)
    q = jax.block_until_ready(q)

    q_ref = dqn_reference(state, params)
    assert q.shape == (batch, num_actions)
    # Kernel uses bf16 weights/activations for L1/L2 with f32 accumulation
    # (L3 fully f32) -> loosened tolerance vs the pure-f32 reference.
    assert jnp.allclose(q, q_ref, atol=2e-2, rtol=2e-2), "mismatch vs reference"

    print("KERNEL_OK")
</pallas_src>

<mosaic_0001>
module attributes {stable_mosaic.version = 11 : i64} {
  func.func @_dqn_mlp_kernel(%arg0: i32, %arg1: memref<16x256xf32, #tpu.memory_space<vmem>>, %arg2: memref<256x512xbf16, #tpu.memory_space<vmem>>, %arg3: memref<1x512xf32, #tpu.memory_space<vmem>>, %arg4: memref<512x512xbf16, #tpu.memory_space<vmem>>, %arg5: memref<1x512xf32, #tpu.memory_space<vmem>>, %arg6: memref<512x128xf32, #tpu.memory_space<vmem>>, %arg7: memref<1x128xf32, #tpu.memory_space<vmem>>, %arg8: memref<16x128xf32, #tpu.memory_space<vmem>>) attributes {dimension_semantics = [#tpu.dimension_semantics<parallel>], iteration_bounds = array<i64: 1>, scalar_prefetch = 0 : i64, scratch_operands = 0 : i64, tpu.core_type = #tpu.core_type<tc>, window_params = [{transform_indices = @transform_0, window_bounds = array<i64: 16, 256>}, {pipeline_mode = #tpu.pipeline_mode<synchronous>, transform_indices = @transform_1, window_bounds = array<i64: 256, 512>}, {pipeline_mode = #tpu.pipeline_mode<synchronous>, transform_indices = @transform_2, window_bounds = array<i64: 1, 512>}, {pipeline_mode = #tpu.pipeline_mode<synchronous>, transform_indices = @transform_3, window_bounds = array<i64: 512, 512>}, {pipeline_mode = #tpu.pipeline_mode<synchronous>, transform_indices = @transform_4, window_bounds = array<i64: 1, 512>}, {pipeline_mode = #tpu.pipeline_mode<synchronous>, transform_indices = @transform_5, window_bounds = array<i64: 512, 128>}, {pipeline_mode = #tpu.pipeline_mode<synchronous>, transform_indices = @transform_6, window_bounds = array<i64: 1, 128>}, {transform_indices = @transform_7, window_bounds = array<i64: 16, 128>}]} {
    %c0 = arith.constant 0 : index
    %c0_0 = arith.constant 0 : index
    %0 = vector.load %arg1[%c0, %c0_0] : memref<16x256xf32, #tpu.memory_space<vmem>>, vector<16x256xf32>
    %1 = arith.truncf %0 : vector<16x256xf32> to vector<16x256xbf16>
    %c0_1 = arith.constant 0 : index
    %c0_2 = arith.constant 0 : index
    %2 = vector.load %arg2[%c0_1, %c0_2] : memref<256x512xbf16, #tpu.memory_space<vmem>>, vector<256x512xbf16>
    %cst = arith.constant dense<0.000000e+00> : vector<16x512xf32>
    %3 = tpu.matmul %1, %2, %cst {dimension_numbers = #tpu.dot_dimension_numbers<[1], [0], [0], [1], [0, 0, 1, 1], [], []>} : vector<16x256xbf16>, vector<256x512xbf16>, vector<16x512xf32> -> vector<16x512xf32>
    %c0_3 = arith.constant 0 : index
    %c0_4 = arith.constant 0 : index
    %4 = vector.load %arg3[%c0_3, %c0_4] : memref<1x512xf32, #tpu.memory_space<vmem>>, vector<1x512xf32>
    %5 = vector.broadcast %4 : vector<1x512xf32> to vector<16x512xf32>
    %6 = arith.addf %3, %5 : vector<16x512xf32>
    %cst_5 = arith.constant 0.000000e+00 : f32
    %7 = vector.broadcast %cst_5 : f32 to vector<16x512xf32>
    %8 = arith.maximumf %6, %7 : vector<16x512xf32>
    %9 = arith.truncf %8 : vector<16x512xf32> to vector<16x512xbf16>
    %c0_6 = arith.constant 0 : index
    %c0_7 = arith.constant 0 : index
    %10 = vector.load %arg4[%c0_6, %c0_7] : memref<512x512xbf16, #tpu.memory_space<vmem>>, vector<512x512xbf16>
    %cst_8 = arith.constant dense<0.000000e+00> : vector<16x512xf32>
    %11 = tpu.matmul %9, %10, %cst_8 {dimension_numbers = #tpu.dot_dimension_numbers<[1], [0], [0], [1], [0, 0, 1, 1], [], []>} : vector<16x512xbf16>, vector<512x512xbf16>, vector<16x512xf32> -> vector<16x512xf32>
    %c0_9 = arith.constant 0 : index
    %c0_10 = arith.constant 0 : index
    %12 = vector.load %arg5[%c0_9, %c0_10] : memref<1x512xf32, #tpu.memory_space<vmem>>, vector<1x512xf32>
    %13 = vector.broadcast %12 : vector<1x512xf32> to vector<16x512xf32>
    %14 = arith.addf %11, %13 : vector<16x512xf32>
    %cst_11 = arith.constant 0.000000e+00 : f32
    %15 = vector.broadcast %cst_11 : f32 to vector<16x512xf32>
    %16 = arith.maximumf %14, %15 : vector<16x512xf32>
    %c0_12 = arith.constant 0 : index
    %c0_13 = arith.constant 0 : index
    %17 = vector.load %arg6[%c0_12, %c0_13] : memref<512x128xf32, #tpu.memory_space<vmem>>, vector<512x128xf32>
    %cst_14 = arith.constant dense<0.000000e+00> : vector<16x128xf32>
    %18 = tpu.matmul %16, %17, %cst_14 {dimension_numbers = #tpu.dot_dimension_numbers<[1], [0], [0], [1], [0, 0, 1, 1], [], []>} : vector<16x512xf32>, vector<512x128xf32>, vector<16x128xf32> -> vector<16x128xf32>
    %c0_15 = arith.constant 0 : index
    %c0_16 = arith.constant 0 : index
    %19 = vector.load %arg7[%c0_15, %c0_16] : memref<1x128xf32, #tpu.memory_space<vmem>>, vector<1x128xf32>
    %20 = vector.broadcast %19 : vector<1x128xf32> to vector<16x128xf32>
    %21 = arith.addf %18, %20 : vector<16x128xf32>
    %c0_17 = arith.constant 0 : index
    %c0_18 = arith.constant 0 : index
    %22 = vector.load %arg8[%c0_17, %c0_18] : memref<16x128xf32, #tpu.memory_space<vmem>>, vector<16x128xf32>
    tpu.vector_store %arg8[%c0_17, %c0_18], %21 {strides = array<i32>} : memref<16x128xf32, #tpu.memory_space<vmem>>, vector<16x128xf32>,
    return
  }
  func.func @transform_0(%arg0: i32) -> (i32, i32) {
    %c0_i32 = arith.constant 0 : i32
    %c0_i32_0 = arith.constant 0 : i32
    return %arg0, %c0_i32 : i32, i32
  }
  func.func @transform_1(%arg0: i32) -> (i32, i32) {
    %c0_i32 = arith.constant 0 : i32
    %c0_i32_0 = arith.constant 0 : i32
    %c0_i32_1 = arith.constant 0 : i32
    return %c0_i32, %c0_i32_0 : i32, i32
  }
  func.func @transform_2(%arg0: i32) -> (i32, i32) {
    %c0_i32 = arith.constant 0 : i32
    %c0_i32_0 = arith.constant 0 : i32
    %c0_i32_1 = arith.constant 0 : i32
    return %c0_i32, %c0_i32_0 : i32, i32
  }
  func.func @transform_3(%arg0: i32) -> (i32, i32) {
    %c0_i32 = arith.constant 0 : i32
    %c0_i32_0 = arith.constant 0 : i32
    %c0_i32_1 = arith.constant 0 : i32
    return %c0_i32, %c0_i32_0 : i32, i32
  }
  func.func @transform_4(%arg0: i32) -> (i32, i32) {
    %c0_i32 = arith.constant 0 : i32
    %c0_i32_0 = arith.constant 0 : i32
    %c0_i32_1 = arith.constant 0 : i32
    return %c0_i32, %c0_i32_0 : i32, i32
  }
  func.func @transform_5(%arg0: i32) -> (i32, i32) {
    %c0_i32 = arith.constant 0 : i32
    %c0_i32_0 = arith.constant 0 : i32
    %c0_i32_1 = arith.constant 0 : i32
    return %c0_i32, %c0_i32_0 : i32, i32
  }
  func.func @transform_6(%arg0: i32) -> (i32, i32) {
    %c0_i32 = arith.constant 0 : i32
    %c0_i32_0 = arith.constant 0 : i32
    %c0_i32_1 = arith.constant 0 : i32
    return %c0_i32, %c0_i32_0 : i32, i32
  }
  func.func @transform_7(%arg0: i32) -> (i32, i32) {
    %c0_i32 = arith.constant 0 : i32
    %c0_i32_0 = arith.constant 0 : i32
    return %arg0, %c0_i32 : i32, i32
  }
}

</mosaic_0001>

<llo_original>
// kernel: tpu_custom_call.1
$region0: #{tpu_custom_call.1}
  #allocation0 [shape = 'u32[]', space=smem, size = 0x4, offset = 0x4, fixed_abs, tag = 'smem constant byte address 0x4 - core index']
  #allocation1 [shape = 'u32[72,128]{1,0:T(1,128)}', space=vmem, size = 0x9000, scoped, tag = 'internal scratch']
  %s0 = inlined_call_operand.hbm [shape: f32[2,256], index: 0, kind: input, shape index: {}]
  %s1 = inlined_call_operand.hbm [shape: bf16[256,512], index: 1, kind: input, shape index: {}]
  %s2 = inlined_call_operand.hbm [shape: f32[1,512], index: 2, kind: input, shape index: {}]
  %s3 = inlined_call_operand.hbm [shape: bf16[512,512], index: 3, kind: input, shape index: {}]
  %s4 = inlined_call_operand.hbm [shape: f32[1,512], index: 4, kind: input, shape index: {}]
  %s5 = inlined_call_operand.hbm [shape: f32[512,128], index: 5, kind: input, shape index: {}]
  %s6 = inlined_call_operand.vmem [shape: f32[1,128], index: 6, kind: input, shape index: {}]
  %s7 = inlined_call_operand.hbm [shape: f32[2,128], index: 7, kind: output, shape index: {}]
  %s8 = sld [smem:[#allocation0]]
  $region62: #{tpu_custom_call.1} parent=0
    _
  %s10 = ssub.s32 1, %s8
  %s11 = scalar_select 0, %s10, %s8
  $region1: #{tpu_custom_call.1} parent=0
    #allocation2 [shape = 'u8[16384]{0}', space=vmem, size = 0x4000, scoped, tag = 'input window, operand 0, single buffered']
    #allocation3 [shape = 's32[1]{0}', space=sflag, size = 0x4, scoped, tag = 'scoped memory for tpu_custom_call.1']
    #allocation4 [shape = 's32[1]{0}', space=sflag, size = 0x4, scoped, tag = 'scoped memory for tpu_custom_call.1']
    #allocation5 [shape = 'u8[262144]{0}', space=vmem, size = 0x40000, scoped, tag = 'input window, operand 1, single buffered']
    #allocation6 [shape = 's32[1]{0}', space=sflag, size = 0x4, scoped, tag = 'scoped memory for tpu_custom_call.1']
    #allocation7 [shape = 'u8[2048]{0}', space=vmem, size = 0x800, scoped, tag = 'input window, operand 2, single buffered']
    #allocation8 [shape = 'u8[524288]{0}', space=vmem, size = 0x80000, scoped, tag = 'input window, operand 3, single buffered']
    #allocation9 [shape = 's32[1]{0}', space=sflag, size = 0x4, scoped, tag = 'scoped memory for tpu_custom_call.1']
    #allocation10 [shape = 'u8[2048]{0}', space=vmem, size = 0x800, scoped, tag = 'input window, operand 4, single buffered']
    #allocation11 [shape = 'u8[262144]{0}', space=vmem, size = 0x40000, scoped, tag = 'input window, operand 5, single buffered']
    #allocation12 [shape = 's32[1]{0}', space=sflag, size = 0x4, scoped, tag = 'scoped memory for tpu_custom_call.1']
    #allocation13 [shape = 'u8[8192]{0}', space=vmem, size = 0x2000, scoped, tag = 'output window, operand 0, single buffered']
    %12 = vsyncpa [#allocation3], 0
    %13 = vsyncpa [#allocation6], 0
    %14 = vsyncpa [#allocation9], 0
    %15 = vsyncpa [#allocation12], 0
    %16 = vsyncpa [#allocation4], 0
    // Predicated region
    $region2: #{tpu_custom_call.1} parent=1 // pred_check
      _
    $region3: #{tpu_custom_call.1} parent=1 // pred_check_branch
      %18 = sbr.rel (0) target = $region5
    $region4: #{tpu_custom_call.1} parent=1 // pred_region
      %20 = vsyncadd [#allocation3], 448
      %s21 = sshll.u32 %s0, 4
      %s22 = int_to_ptr.hbm [resolvable:$true] %s21
      %s23 = sshll.u32 [#allocation2], 4
      %s24 = int_to_ptr.vmem [resolvable:$true] %s23
      %29 = dma.hbm_to_vmem [thread:$0]  %s22, 64, %s24, [#allocation3], 64, 64, 4
    $region5: #{tpu_custom_call.1} parent=1 // pred_fallthru
      _
    // Predicated region
    $region6: #{tpu_custom_call.1} parent=1 // pred_check
      _
    $region7: #{tpu_custom_call.1} parent=1 // pred_check_branch
      %31 = sbr.rel (0) target = $region9
    $region8: #{tpu_custom_call.1} parent=1 // pred_region
      %33 = vsyncadd [#allocation6], 0
      %s34 = sshll.u32 %s1, 4
      %s35 = int_to_ptr.hbm [resolvable:$true] %s34
      %s36 = sshll.u32 [#allocation5], 4
      %s37 = int_to_ptr.vmem [resolvable:$true] %s36
      %42 = dma.hbm_to_vmem [thread:$0]  %s35, 8192, %s37, [#allocation6], 256, 256, 16
    $region9: #{tpu_custom_call.1} parent=1 // pred_fallthru
      _
    // Predicated region
    $region10: #{tpu_custom_call.1} parent=1 // pred_check
      _
    $region11: #{tpu_custom_call.1} parent=1 // pred_check_branch
      %44 = sbr.rel (0) target = $region13
    $region12: #{tpu_custom_call.1} parent=1 // pred_region
      %46 = vsyncadd [#allocation6], 0
      %s48 = sshll.u32 %s2, 4
      %s49 = int_to_ptr.hbm [resolvable:$true] %s48
      %s50 = sshll.u32 [#allocation7], 4
      %s51 = int_to_ptr.vmem [resolvable:$true] %s50
      %53 = dma.hbm_to_vmem [thread:$0]  %s49, 64, %s51, [#allocation6]
    $region13: #{tpu_custom_call.1} parent=1 // pred_fallthru
      _
    // Predicated region
    $region14: #{tpu_custom_call.1} parent=1 // pred_check
      _
    $region15: #{tpu_custom_call.1} parent=1 // pred_check_branch
      %55 = sbr.rel (0) target = $region17
    $region16: #{tpu_custom_call.1} parent=1 // pred_region
      %57 = vsyncadd [#allocation9], 0
      %s58 = sshll.u32 %s3, 4
      %s59 = int_to_ptr.hbm [resolvable:$true] %s58
      %s60 = sshll.u32 [#allocation8], 4
      %s61 = int_to_ptr.vmem [resolvable:$true] %s60
      %66 = dma.hbm_to_vmem [thread:$0]  %s59, 16384, %s61, [#allocation9], 256, 256, 16
    $region17: #{tpu_custom_call.1} parent=1 // pred_fallthru
      _
    // Predicated region
    $region18: #{tpu_custom_call.1} parent=1 // pred_check
      _
    $region19: #{tpu_custom_call.1} parent=1 // pred_check_branch
      %68 = sbr.rel (0) target = $region21
    $region20: #{tpu_custom_call.1} parent=1 // pred_region
      %70 = vsyncadd [#allocation9], 0
      %s72 = sshll.u32 %s4, 4
      %s73 = int_to_ptr.hbm [resolvable:$true] %s72
      %s74 = sshll.u32 [#allocation10], 4
      %s75 = int_to_ptr.vmem [resolvable:$true] %s74
      %77 = dma.hbm_to_vmem [thread:$0]  %s73, 64, %s75, [#allocation9]
    $region21: #{tpu_custom_call.1} parent=1 // pred_fallthru
      _
    // Predicated region
    $region22: #{tpu_custom_call.1} parent=1 // pred_check
      _
    $region23: #{tpu_custom_call.1} parent=1 // pred_check_branch
      %79 = sbr.rel (0) target = $region25
    $region24: #{tpu_custom_call.1} parent=1 // pred_region
      %81 = vsyncadd [#allocation12], 0
      %s82 = sshll.u32 %s5, 4
      %s83 = int_to_ptr.hbm [resolvable:$true] %s82
      %s84 = sshll.u32 [#allocation11], 4
      %s85 = int_to_ptr.vmem [resolvable:$true] %s84
      %90 = dma.hbm_to_vmem [thread:$0]  %s83, 8192, %s85, [#allocation12], 128, 128, 8
    $region25: #{tpu_custom_call.1} parent=1 // pred_fallthru
      _
    // Predicated region
    $region26: #{tpu_custom_call.1} parent=1 // pred_check
      _
    $region27: #{tpu_custom_call.1} parent=1 // pred_check_branch
      %92 = sbr.rel (0) target = $region29
    $region28: #{tpu_custom_call.1} parent=1 // pred_region
      _
    $region29: #{tpu_custom_call.1} parent=1 // pred_fallthru
      _
    // Predicated region
    $region30: #{tpu_custom_call.1} parent=1 // pred_check
      _
    $region31: #{tpu_custom_call.1} parent=1 // pred_check_branch
      %94 = sbr.rel (0) target = $region33
    $region32: #{tpu_custom_call.1} parent=1 // pred_region
      %96 = dma.done [#allocation3], 512
    $region33: #{tpu_custom_call.1} parent=1 // pred_fallthru
      _
    // Predicated region
    $region34: #{tpu_custom_call.1} parent=1 // pred_check
      _
    $region35: #{tpu_custom_call.1} parent=1 // pred_check_branch
      %98 = sbr.rel (0) target = $region37
    $region36: #{tpu_custom_call.1} parent=1 // pred_region
      %100 = dma.done [#allocation6], 8192
    $region37: #{tpu_custom_call.1} parent=1 // pred_fallthru
      _
    // Predicated region
    $region38: #{tpu_custom_call.1} parent=1 // pred_check
      _
    $region39: #{tpu_custom_call.1} parent=1 // pred_check_branch
      %102 = sbr.rel (0) target = $region41
    $region40: #{tpu_custom_call.1} parent=1 // pred_region
      %104 = dma.done [#allocation6], 64
    $region41: #{tpu_custom_call.1} parent=1 // pred_fallthru
      _
    // Predicated region
    $region42: #{tpu_custom_call.1} parent=1 // pred_check
      _
    $region43: #{tpu_custom_call.1} parent=1 // pred_check_branch
      %106 = sbr.rel (0) target = $region45
    $region44: #{tpu_custom_call.1} parent=1 // pred_region
      %108 = dma.done [#allocation9], 16384
    $region45: #{tpu_custom_call.1} parent=1 // pred_fallthru
      _
    // Predicated region
    $region46: #{tpu_custom_call.1} parent=1 // pred_check
      _
    $region47: #{tpu_custom_call.1} parent=1 // pred_check_branch
      %110 = sbr.rel (0) target = $region49
    $region48: #{tpu_custom_call.1} parent=1 // pred_region
      %112 = dma.done [#allocation9], 64
    $region49: #{tpu_custom_call.1} parent=1 // pred_fallthru
      _
    // Predicated region
    $region50: #{tpu_custom_call.1} parent=1 // pred_check
      _
    $region51: #{tpu_custom_call.1} parent=1 // pred_check_branch
      %114 = sbr.rel (0) target = $region53
    $region52: #{tpu_custom_call.1} parent=1 // pred_region
      %116 = dma.done [#allocation12], 8192
    $region53: #{tpu_custom_call.1} parent=1 // pred_fallthru
      _
    %v117 = vld [vmem:[#allocation2] sm:$0xf]
    %v118 = vld [vmem:[#allocation2 + $0x4] sm:$0xf]
    %v119 = vld [vmem:[#allocation2 + $0x8] sm:$0xf]
    %v120 = vld [vmem:[#allocation2 + $0xc] sm:$0xf]
    %v121 = vld [vmem:[#allocation2 + $0x10] sm:$0xf]
    %v122 = vld [vmem:[#allocation2 + $0x14] sm:$0xf]
    %v123 = vld [vmem:[#allocation2 + $0x18] sm:$0xf]
    %v124 = vld [vmem:[#allocation2 + $0x1c] sm:$0xf]
    %133 = vst [vmem:[#allocation1] ss:$4 sm:$0xff] %v117
    %s134 = scalar_lea.vmem [#allocation1], 1
    %135 = vst [vmem:[%s134] ss:$4 sm:$0xff] %v118
    %s136 = scalar_lea.vmem [#allocation1], 2
    %137 = vst [vmem:[%s136] ss:$4 sm:$0xff] %v119
    %s138 = scalar_lea.vmem [#allocation1], 3
    %139 = vst [vmem:[%s138] ss:$4 sm:$0xff] %v120
    %s140 = scalar_lea.vmem [#allocation1], 32
    %141 = vst [vmem:[%s140] ss:$4 sm:$0xff] %v121
    %s142 = scalar_lea.vmem [#allocation1], 33
    %143 = vst [vmem:[%s142] ss:$4 sm:$0xff] %v122
    %s144 = scalar_lea.vmem [#allocation1], 34
    %145 = vst [vmem:[%s144] ss:$4 sm:$0xff] %v123
    %s146 = scalar_lea.vmem [#allocation1], 35
    %147 = vst [vmem:[%s146] ss:$4 sm:$0xff] %v124
    %v148 = vld.sshfl [vmem:[#allocation1] sm:$0xff pattern:$0x73625140]
    %v149 = vld.sshfl [vmem:[#allocation1 + $0x8] sm:$0xff pattern:$0x73625140]
    %v150 = vld.sshfl [vmem:[#allocation1 + $0x20] sm:$0xff pattern:$0x73625140]
    %v151 = vld.sshfl [vmem:[#allocation1 + $0x28] sm:$0xff pattern:$0x73625140]
    %v156 = vpack.c.bf16 %v150, %v148
    %v157 = vpack.c.bf16 %v151, %v149
    %v158 = vld [vmem:[#allocation5] sm:$0xff]
    %v159 = vld [vmem:[#allocation5 + $0x8] sm:$0xff]
    %v160 = vld [vmem:[#allocation5 + $0x10] sm:$0xff]
    %v161 = vld [vmem:[#allocation5 + $0x18] sm:$0xff]
    %v162 = vld [vmem:[#allocation5 + $0x20] sm:$0xff]
    %v163 = vld [vmem:[#allocation5 + $0x28] sm:$0xff]
    %v164 = vld [vmem:[#allocation5 + $0x30] sm:$0xff]
    %v165 = vld [vmem:[#allocation5 + $0x38] sm:$0xff]
    %v166 = vld [vmem:[#allocation5 + $0x40] sm:$0xff]
    %v167 = vld [vmem:[#allocation5 + $0x48] sm:$0xff]
    %v168 = vld [vmem:[#allocation5 + $0x50] sm:$0xff]
    %v169 = vld [vmem:[#allocation5 + $0x58] sm:$0xff]
    %v170 = vld [vmem:[#allocation5 + $0x60] sm:$0xff]
    %v171 = vld [vmem:[#allocation5 + $0x68] sm:$0xff]
    %v172 = vld [vmem:[#allocation5 + $0x70] sm:$0xff]
    %v173 = vld [vmem:[#allocation5 + $0x78] sm:$0xff]
    %v174 = vld [vmem:[#allocation5 + $0x80] sm:$0xff]
    %v175 = vld [vmem:[#allocation5 + $0x88] sm:$0xff]
    %v176 = vld [vmem:[#allocation5 + $0x90] sm:$0xff]
    %v177 = vld [vmem:[#allocation5 + $0x98] sm:$0xff]
    %v178 = vld [vmem:[#allocation5 + $0xa0] sm:$0xff]
    %v179 = vld [vmem:[#allocation5 + $0xa8] sm:$0xff]
    %v180 = vld [vmem:[#allocation5 + $0xb0] sm:$0xff]
    %v181 = vld [vmem:[#allocation5 + $0xb8] sm:$0xff]
    %v182 = vld [vmem:[#allocation5 + $0xc0] sm:$0xff]
    %v183 = vld [vmem:[#allocation5 + $0xc8] sm:$0xff]
    %v184 = vld [vmem:[#allocation5 + $0xd0] sm:$0xff]
    %v185 = vld [vmem:[#allocation5 + $0xd8] sm:$0xff]
    %v186 = vld [vmem:[#allocation5 + $0xe0] sm:$0xff]
    %v187 = vld [vmem:[#allocation5 + $0xe8] sm:$0xff]
    %v188 = vld [vmem:[#allocation5 + $0xf0] sm:$0xff]
    %v189 = vld [vmem:[#allocation5 + $0xf8] sm:$0xff]
    %v190 = vld [vmem:[#allocation5 + $0x100] sm:$0xff]
    %v191 = vld [vmem:[#allocation5 + $0x108] sm:$0xff]
    %v192 = vld [vmem:[#allocation5 + $0x110] sm:$0xff]
    %v193 = vld [vmem:[#allocation5 + $0x118] sm:$0xff]
    %v194 = vld [vmem:[#allocation5 + $0x120] sm:$0xff]
    %v195 = vld [vmem:[#allocation5 + $0x128] sm:$0xff]
    %v196 = vld [vmem:[#allocation5 + $0x130] sm:$0xff]
    %v197 = vld [vmem:[#allocation5 + $0x138] sm:$0xff]
    %v198 = vld [vmem:[#allocation5 + $0x140] sm:$0xff]
    %v199 = vld [vmem:[#allocation5 + $0x148] sm:$0xff]
    %v200 = vld [vmem:[#allocation5 + $0x150] sm:$0xff]
    %v201 = vld [vmem:[#allocation5 + $0x158] sm:$0xff]
    %v202 = vld [vmem:[#allocation5 + $0x160] sm:$0xff]
    %v203 = vld [vmem:[#allocation5 + $0x168] sm:$0xff]
    %v204 = vld [vmem:[#allocation5 + $0x170] sm:$0xff]
    %v205 = vld [vmem:[#allocation5 + $0x178] sm:$0xff]
    %v206 = vld [vmem:[#allocation5 + $0x180] sm:$0xff]
    %v207 = vld [vmem:[#allocation5 + $0x188] sm:$0xff]
    %v208 = vld [vmem:[#allocation5 + $0x190] sm:$0xff]
    %v209 = vld [vmem:[#allocation5 + $0x198] sm:$0xff]
    %v210 = vld [vmem:[#allocation5 + $0x1a0] sm:$0xff]
    %v211 = vld [vmem:[#allocation5 + $0x1a8] sm:$0xff]
    %v212 = vld [vmem:[#allocation5 + $0x1b0] sm:$0xff]
    %v213 = vld [vmem:[#allocation5 + $0x1b8] sm:$0xff]
    %v214 = vld [vmem:[#allocation5 + $0x1c0] sm:$0xff]
    %v215 = vld [vmem:[#allocation5 + $0x1c8] sm:$0xff]
    %v216 = vld [vmem:[#allocation5 + $0x1d0] sm:$0xff]
    %v217 = vld [vmem:[#allocation5 + $0x1d8] sm:$0xff]
    %v218 = vld [vmem:[#allocation5 + $0x1e0] sm:$0xff]
    %v219 = vld [vmem:[#allocation5 + $0x1e8] sm:$0xff]
    %v220 = vld [vmem:[#allocation5 + $0x1f0] sm:$0xff]
    %v221 = vld [vmem:[#allocation5 + $0x1f8] sm:$0xff]
    %v222 = vld [vmem:[#allocation7] sm:$0xf]
    %v224 = vperm.slane %v222, 0
    %v225 = vperm.slane %v222, 1
    %v226 = vperm.slane %v222, 2
    %v227 = vperm.slane %v222, 3
    %v296 = vunpack.c.l.b16 %v158
    %v297 = vunpack.c.h.b16 %v158
    %v298 = vunpack.c.l.b16 %v159
    %v299 = vunpack.c.h.b16 %v159
    %v300 = vunpack.c.l.b16 %v160
    %v301 = vunpack.c.h.b16 %v160
    %v302 = vunpack.c.l.b16 %v161
    %v303 = vunpack.c.h.b16 %v161
    %v304 = vunpack.c.l.b16 %v162
    %v305 = vunpack.c.h.b16 %v162
    %v306 = vunpack.c.l.b16 %v163
    %v307 = vunpack.c.h.b16 %v163
    %v308 = vunpack.c.l.b16 %v164
    %v309 = vunpack.c.h.b16 %v164
    %v310 = vunpack.c.l.b16 %v165
    %v311 = vunpack.c.h.b16 %v165
    %v312 = vunpack.c.l.b16 %v166
    %v313 = vunpack.c.h.b16 %v166
    %v314 = vunpack.c.l.b16 %v167
    %v315 = vunpack.c.h.b16 %v167
    %v316 = vunpack.c.l.b16 %v168
    %v317 = vunpack.c.h.b16 %v168
    %v318 = vunpack.c.l.b16 %v169
    %v319 = vunpack.c.h.b16 %v169
    %v320 = vunpack.c.l.b16 %v170
    %v321 = vunpack.c.h.b16 %v170
    %v322 = vunpack.c.l.b16 %v171
    %v323 = vunpack.c.h.b16 %v171
    %v324 = vunpack.c.l.b16 %v172
    %v325 = vunpack.c.h.b16 %v172
    %v326 = vunpack.c.l.b16 %v173
    %v327 = vunpack.c.h.b16 %v173
    %v328 = vunpack.c.l.b16 %v174
    %v329 = vunpack.c.h.b16 %v174
    %v330 = vunpack.c.l.b16 %v175
    %v331 = vunpack.c.h.b16 %v175
    %v332 = vunpack.c.l.b16 %v176
    %v333 = vunpack.c.h.b16 %v176
    %v334 = vunpack.c.l.b16 %v177
    %v335 = vunpack.c.h.b16 %v177
    %v336 = vunpack.c.l.b16 %v178
    %v337 = vunpack.c.h.b16 %v178
    %v338 = vunpack.c.l.b16 %v179
    %v339 = vunpack.c.h.b16 %v179
    %v340 = vunpack.c.l.b16 %v180
    %v341 = vunpack.c.h.b16 %v180
    %v342 = vunpack.c.l.b16 %v181
    %v343 = vunpack.c.h.b16 %v181
    %v344 = vunpack.c.l.b16 %v182
    %v345 = vunpack.c.h.b16 %v182
    %v346 = vunpack.c.l.b16 %v183
    %v347 = vunpack.c.h.b16 %v183
    %v348 = vunpack.c.l.b16 %v184
    %v349 = vunpack.c.h.b16 %v184
    %v350 = vunpack.c.l.b16 %v185
    %v351 = vunpack.c.h.b16 %v185
    %v352 = vunpack.c.l.b16 %v186
    %v353 = vunpack.c.h.b16 %v186
    %v354 = vunpack.c.l.b16 %v187
    %v355 = vunpack.c.h.b16 %v187
    %v356 = vunpack.c.l.b16 %v188
    %v357 = vunpack.c.h.b16 %v188
    %v358 = vunpack.c.l.b16 %v189
    %v359 = vunpack.c.h.b16 %v189
    %v360 = vunpack.c.l.b16 %v190
    %v361 = vunpack.c.h.b16 %v190
    %v362 = vunpack.c.l.b16 %v191
    %v363 = vunpack.c.h.b16 %v191
    %v364 = vunpack.c.l.b16 %v192
    %v365 = vunpack.c.h.b16 %v192
    %v366 = vunpack.c.l.b16 %v193
    %v367 = vunpack.c.h.b16 %v193
    %v368 = vunpack.c.l.b16 %v194
    %v369 = vunpack.c.h.b16 %v194
    %v370 = vunpack.c.l.b16 %v195
    %v371 = vunpack.c.h.b16 %v195
    %v372 = vunpack.c.l.b16 %v196
    %v373 = vunpack.c.h.b16 %v196
    %v374 = vunpack.c.l.b16 %v197
    %v375 = vunpack.c.h.b16 %v197
    %v376 = vunpack.c.l.b16 %v198
    %v377 = vunpack.c.h.b16 %v198
    %v378 = vunpack.c.l.b16 %v199
    %v379 = vunpack.c.h.b16 %v199
    %v380 = vunpack.c.l.b16 %v200
    %v381 = vunpack.c.h.b16 %v200
    %v382 = vunpack.c.l.b16 %v201
    %v383 = vunpack.c.h.b16 %v201
    %v384 = vunpack.c.l.b16 %v202
    %v385 = vunpack.c.h.b16 %v202
    %v386 = vunpack.c.l.b16 %v203
    %v387 = vunpack.c.h.b16 %v203
    %v388 = vunpack.c.l.b16 %v204
    %v389 = vunpack.c.h.b16 %v204
    %v390 = vunpack.c.l.b16 %v205
    %v391 = vunpack.c.h.b16 %v205
    %v392 = vunpack.c.l.b16 %v206
    %v393 = vunpack.c.h.b16 %v206
    %v394 = vunpack.c.l.b16 %v207
    %v395 = vunpack.c.h.b16 %v207
    %v396 = vunpack.c.l.b16 %v208
    %v397 = vunpack.c.h.b16 %v208
    %v398 = vunpack.c.l.b16 %v209
    %v399 = vunpack.c.h.b16 %v209
    %v400 = vunpack.c.l.b16 %v210
    %v401 = vunpack.c.h.b16 %v210
    %v402 = vunpack.c.l.b16 %v211
    %v403 = vunpack.c.h.b16 %v211
    %v404 = vunpack.c.l.b16 %v212
    %v405 = vunpack.c.h.b16 %v212
    %v406 = vunpack.c.l.b16 %v213
    %v407 = vunpack.c.h.b16 %v213
    %v408 = vunpack.c.l.b16 %v214
    %v409 = vunpack.c.h.b16 %v214
    %v410 = vunpack.c.l.b16 %v215
    %v411 = vunpack.c.h.b16 %v215
    %v412 = vunpack.c.l.b16 %v216
    %v413 = vunpack.c.h.b16 %v216
    %v414 = vunpack.c.l.b16 %v217
    %v415 = vunpack.c.h.b16 %v217
    %v416 = vunpack.c.l.b16 %v218
    %v417 = vunpack.c.h.b16 %v218
    %v418 = vunpack.c.l.b16 %v219
    %v419 = vunpack.c.h.b16 %v219
    %v420 = vunpack.c.l.b16 %v220
    %v421 = vunpack.c.h.b16 %v220
    %v422 = vunpack.c.l.b16 %v221
    %v423 = vunpack.c.h.b16 %v221
    %v424 = vpack.c.b16 %v300, %v296
    %v425 = vpack.c.b16 %v301, %v297
    %v426 = vpack.c.b16 %v302, %v298
    %v427 = vpack.c.b16 %v303, %v299
    %v428 = vpack.c.b16 %v308, %v304
    %v429 = vpack.c.b16 %v309, %v305
    %v430 = vpack.c.b16 %v310, %v306
    %v431 = vpack.c.b16 %v311, %v307
    %v432 = vpack.c.b16 %v316, %v312
    %v433 = vpack.c.b16 %v317, %v313
    %v434 = vpack.c.b16 %v318, %v314
    %v435 = vpack.c.b16 %v319, %v315
    %v436 = vpack.c.b16 %v324, %v320
    %v437 = vpack.c.b16 %v325, %v321
    %v438 = vpack.c.b16 %v326, %v322
    %v439 = vpack.c.b16 %v327, %v323
    %v440 = vpack.c.b16 %v332, %v328
    %v441 = vpack.c.b16 %v333, %v329
    %v442 = vpack.c.b16 %v334, %v330
    %v443 = vpack.c.b16 %v335, %v331
    %v444 = vpack.c.b16 %v340, %v336
    %v445 = vpack.c.b16 %v341, %v337
    %v446 = vpack.c.b16 %v342, %v338
    %v447 = vpack.c.b16 %v343, %v339
    %v448 = vpack.c.b16 %v348, %v344
    %v449 = vpack.c.b16 %v349, %v345
    %v450 = vpack.c.b16 %v350, %v346
    %v451 = vpack.c.b16 %v351, %v347
    %v452 = vpack.c.b16 %v356, %v352
    %v453 = vpack.c.b16 %v357, %v353
    %v454 = vpack.c.b16 %v358, %v354
    %v455 = vpack.c.b16 %v359, %v355
    %v456 = vpack.c.b16 %v364, %v360
    %v457 = vpack.c.b16 %v365, %v361
    %v458 = vpack.c.b16 %v366, %v362
    %v459 = vpack.c.b16 %v367, %v363
    %v460 = vpack.c.b16 %v372, %v368
    %v461 = vpack.c.b16 %v373, %v369
    %v462 = vpack.c.b16 %v374, %v370
    %v463 = vpack.c.b16 %v375, %v371
    %v464 = vpack.c.b16 %v380, %v376
    %v465 = vpack.c.b16 %v381, %v377
    %v466 = vpack.c.b16 %v382, %v378
    %v467 = vpack.c.b16 %v383, %v379
    %v468 = vpack.c.b16 %v388, %v384
    %v469 = vpack.c.b16 %v389, %v385
    %v470 = vpack.c.b16 %v390, %v386
    %v471 = vpack.c.b16 %v391, %v387
    %v472 = vpack.c.b16 %v396, %v392
    %v473 = vpack.c.b16 %v397, %v393
    %v474 = vpack.c.b16 %v398, %v394
    %v475 = vpack.c.b16 %v399, %v395
    %v476 = vpack.c.b16 %v404, %v400
    %v477 = vpack.c.b16 %v405, %v401
    %v478 = vpack.c.b16 %v406, %v402
    %v479 = vpack.c.b16 %v407, %v403
    %v480 = vpack.c.b16 %v412, %v408
    %v481 = vpack.c.b16 %v413, %v409
    %v482 = vpack.c.b16 %v414, %v410
    %v483 = vpack.c.b16 %v415, %v411
    %v484 = vpack.c.b16 %v420, %v416
    %v485 = vpack.c.b16 %v421, %v417
    %v486 = vpack.c.b16 %v422, %v418
    %v487 = vpack.c.b16 %v423, %v419
    %552 = vmatpush.bf16.msra.mxu0 %v452
    %553 = vmatpush.bf16.msra.mxu0 %v448
    %554 = vmatpush.bf16.msra.mxu0 %v444
    %555 = vmatpush.bf16.msra.mxu0 %v440
    %556 = vmatpush.bf16.msra.mxu0 %v436
    %557 = vmatpush.bf16.msra.mxu0 %v432
    %558 = vmatpush.bf16.msra.mxu0 %v428
    %559 = vmatpush.bf16.msra.mxu0 %v424
    %560 = vmatmul.bf16.gmra.mxu0 %v156
    %v561 = vpop.f32.mrf.mxu0
    %v562 = vadd.f32 %v224, %v561
    %v563 = vpop.f32.mrf.mxu0
    %v564 = vadd.f32 %v224, %v563
    %565 = vdwg.mxu0
    %566 = vmatpush.bf16.msra.mxu0 %v484
    %567 = vmatpush.bf16.msra.mxu0 %v480
    %568 = vmatpush.bf16.msra.mxu0 %v476
    %569 = vmatpush.bf16.msra.mxu0 %v472
    %570 = vmatpush.bf16.msra.mxu0 %v468
    %571 = vmatpush.bf16.msra.mxu0 %v464
    %572 = vmatpush.bf16.msra.mxu0 %v460
    %573 = vmatpush.bf16.msra.mxu0 %v456
    %574 = vmatmul.bf16.gmra.mxu0 %v157
    %v575 = vpop.f32.mrf.mxu0
    %v576 = vadd.f32 %v562, %v575
    %v577 = vpop.f32.mrf.mxu0
    %v578 = vadd.f32 %v564, %v577
    %579 = vdwg.mxu0
    %580 = vmatpush.bf16.msra.mxu0 %v453
    %581 = vmatpush.bf16.msra.mxu0 %v449
    %582 = vmatpush.bf16.msra.mxu0 %v445
    %583 = vmatpush.bf16.msra.mxu0 %v441
    %584 = vmatpush.bf16.msra.mxu0 %v437
    %585 = vmatpush.bf16.msra.mxu0 %v433
    %586 = vmatpush.bf16.msra.mxu0 %v429
    %587 = vmatpush.bf16.msra.mxu0 %v425
    %588 = vmatmul.bf16.gmra.mxu0 %v156
    %v589 = vpop.f32.mrf.mxu0
    %v590 = vadd.f32 %v225, %v589
    %v591 = vpop.f32.mrf.mxu0
    %v592 = vadd.f32 %v225, %v591
    %593 = vdwg.mxu0
    %594 = vmatpush.bf16.msra.mxu0 %v485
    %595 = vmatpush.bf16.msra.mxu0 %v481
    %596 = vmatpush.bf16.msra.mxu0 %v477
    %597 = vmatpush.bf16.msra.mxu0 %v473
    %598 = vmatpush.bf16.msra.mxu0 %v469
    %599 = vmatpush.bf16.msra.mxu0 %v465
    %600 = vmatpush.bf16.msra.mxu0 %v461
    %601 = vmatpush.bf16.msra.mxu0 %v457
    %602 = vmatmul.bf16.gmra.mxu0 %v157
    %v603 = vpop.f32.mrf.mxu0
    %v604 = vadd.f32 %v590, %v603
    %v605 = vpop.f32.mrf.mxu0
    %v606 = vadd.f32 %v592, %v605
    %607 = vdwg.mxu0
    %608 = vmatpush.bf16.msra.mxu0 %v454
    %609 = vmatpush.bf16.msra.mxu0 %v450
    %610 = vmatpush.bf16.msra.mxu0 %v446
    %611 = vmatpush.bf16.msra.mxu0 %v442
    %612 = vmatpush.bf16.msra.mxu0 %v438
    %613 = vmatpush.bf16.msra.mxu0 %v434
    %614 = vmatpush.bf16.msra.mxu0 %v430
    %615 = vmatpush.bf16.msra.mxu0 %v426
    %616 = vmatmul.bf16.gmra.mxu0 %v156
    %v617 = vpop.f32.mrf.mxu0
    %v618 = vadd.f32 %v226, %v617
    %v619 = vpop.f32.mrf.mxu0
    %v620 = vadd.f32 %v226, %v619
    %621 = vdwg.mxu0
    %622 = vmatpush.bf16.msra.mxu0 %v486
    %623 = vmatpush.bf16.msra.mxu0 %v482
    %624 = vmatpush.bf16.msra.mxu0 %v478
    %625 = vmatpush.bf16.msra.mxu0 %v474
    %626 = vmatpush.bf16.msra.mxu0 %v470
    %627 = vmatpush.bf16.msra.mxu0 %v466
    %628 = vmatpush.bf16.msra.mxu0 %v462
    %629 = vmatpush.bf16.msra.mxu0 %v458
    %630 = vmatmul.bf16.gmra.mxu0 %v157
    %v631 = vpop.f32.mrf.mxu0
    %v632 = vadd.f32 %v618, %v631
    %v633 = vpop.f32.mrf.mxu0
    %v634 = vadd.f32 %v620, %v633
    %635 = vdwg.mxu0
    %636 = vmatpush.bf16.msra.mxu0 %v455
    %637 = vmatpush.bf16.msra.mxu0 %v451
    %638 = vmatpush.bf16.msra.mxu0 %v447
    %639 = vmatpush.bf16.msra.mxu0 %v443
    %640 = vmatpush.bf16.msra.mxu0 %v439
    %641 = vmatpush.bf16.msra.mxu0 %v435
    %642 = vmatpush.bf16.msra.mxu0 %v431
    %643 = vmatpush.bf16.msra.mxu0 %v427
    %644 = vmatmul.bf16.gmra.mxu0 %v156
    %v645 = vpop.f32.mrf.mxu0
    %v646 = vadd.f32 %v227, %v645
    %v647 = vpop.f32.mrf.mxu0
    %v648 = vadd.f32 %v227, %v647
    %649 = vdwg.mxu0
    %650 = vmatpush.bf16.msra.mxu0 %v487
    %651 = vmatpush.bf16.msra.mxu0 %v483
    %652 = vmatpush.bf16.msra.mxu0 %v479
    %653 = vmatpush.bf16.msra.mxu0 %v475
    %654 = vmatpush.bf16.msra.mxu0 %v471
    %655 = vmatpush.bf16.msra.mxu0 %v467
    %656 = vmatpush.bf16.msra.mxu0 %v463
    %657 = vmatpush.bf16.msra.mxu0 %v459
    %658 = vmatmul.bf16.gmra.mxu0 %v157
    %v659 = vpop.f32.mrf.mxu0
    %v660 = vadd.f32 %v646, %v659
    %v661 = vpop.f32.mrf.mxu0
    %v662 = vadd.f32 %v648, %v661
    %663 = vdwg.mxu0
    %v664 = vmax.f32 %v576, 0.0
    %v665 = vmax.f32 %v604, 0.0
    %v666 = vmax.f32 %v632, 0.0
    %v667 = vmax.f32 %v660, 0.0
    %v668 = vmax.f32 %v578, 0.0
    %v669 = vmax.f32 %v606, 0.0
    %v670 = vmax.f32 %v634, 0.0
    %v671 = vmax.f32 %v662, 0.0
    %v672 = vpack.c.bf16 %v668, %v664
    %v673 = vpack.c.bf16 %v669, %v665
    %v674 = vpack.c.bf16 %v670, %v666
    %v675 = vpack.c.bf16 %v671, %v667
    %v676 = vld [vmem:[#allocation8] sm:$0xff]
    %v677 = vld [vmem:[#allocation8 + $0x8] sm:$0xff]
    %v678 = vld [vmem:[#allocation8 + $0x10] sm:$0xff]
    %v679 = vld [vmem:[#allocation8 + $0x18] sm:$0xff]
    %v680 = vld [vmem:[#allocation8 + $0x20] sm:$0xff]
    %v681 = vld [vmem:[#allocation8 + $0x28] sm:$0xff]
    %v682 = vld [vmem:[#allocation8 + $0x30] sm:$0xff]
    %v683 = vld [vmem:[#allocation8 + $0x38] sm:$0xff]
    %v684 = vld [vmem:[#allocation8 + $0x40] sm:$0xff]
    %v685 = vld [vmem:[#allocation8 + $0x48] sm:$0xff]
    %v686 = vld [vmem:[#allocation8 + $0x50] sm:$0xff]
    %v687 = vld [vmem:[#allocation8 + $0x58] sm:$0xff]
    %v688 = vld [vmem:[#allocation8 + $0x60] sm:$0xff]
    %v689 = vld [vmem:[#allocation8 + $0x68] sm:$0xff]
    %v690 = vld [vmem:[#allocation8 + $0x70] sm:$0xff]
    %v691 = vld [vmem:[#allocation8 + $0x78] sm:$0xff]
    %v692 = vld [vmem:[#allocation8 + $0x80] sm:$0xff]
    %v693 = vld [vmem:[#allocation8 + $0x88] sm:$0xff]
    %v694 = vld [vmem:[#allocation8 + $0x90] sm:$0xff]
    %v695 = vld [vmem:[#allocation8 + $0x98] sm:$0xff]
    %v696 = vld [vmem:[#allocation8 + $0xa0] sm:$0xff]
    %v697 = vld [vmem:[#allocation8 + $0xa8] sm:$0xff]
    %v698 = vld [vmem:[#allocation8 + $0xb0] sm:$0xff]
    %v699 = vld [vmem:[#allocation8 + $0xb8] sm:$0xff]
    %v700 = vld [vmem:[#allocation8 + $0xc0] sm:$0xff]
    %v701 = vld [vmem:[#allocation8 + $0xc8] sm:$0xff]
    %v702 = vld [vmem:[#allocation8 + $0xd0] sm:$0xff]
    %v703 = vld [vmem:[#allocation8 + $0xd8] sm:$0xff]
    %v704 = vld [vmem:[#allocation8 + $0xe0] sm:$0xff]
    %v705 = vld [vmem:[#allocation8 + $0xe8] sm:$0xff]
    %v706 = vld [vmem:[#allocation8 + $0xf0] sm:$0xff]
    %v707 = vld [vmem:[#allocation8 + $0xf8] sm:$0xff]
    %v708 = vld [vmem:[#allocation8 + $0x100] sm:$0xff]
    %v709 = vld [vmem:[#allocation8 + $0x108] sm:$0xff]
    %v710 = vld [vmem:[#allocation8 + $0x110] sm:$0xff]
    %v711 = vld [vmem:[#allocation8 + $0x118] sm:$0xff]
    %v712 = vld [vmem:[#allocation8 + $0x120] sm:$0xff]
    %v713 = vld [vmem:[#allocation8 + $0x128] sm:$0xff]
    %v714 = vld [vmem:[#allocation8 + $0x130] sm:$0xff]
    %v715 = vld [vmem:[#allocation8 + $0x138] sm:$0xff]
    %v716 = vld [vmem:[#allocation8 + $0x140] sm:$0xff]
    %v717 = vld [vmem:[#allocation8 + $0x148] sm:$0xff]
    %v718 = vld [vmem:[#allocation8 + $0x150] sm:$0xff]
    %v719 = vld [vmem:[#allocation8 + $0x158] sm:$0xff]
    %v720 = vld [vmem:[#allocation8 + $0x160] sm:$0xff]
    %v721 = vld [vmem:[#allocation8 + $0x168] sm:$0xff]
    %v722 = vld [vmem:[#allocation8 + $0x170] sm:$0xff]
    %v723 = vld [vmem:[#allocation8 + $0x178] sm:$0xff]
    %v724 = vld [vmem:[#allocation8 + $0x180] sm:$0xff]
    %v725 = vld [vmem:[#allocation8 + $0x188] sm:$0xff]
    %v726 = vld [vmem:[#allocation8 + $0x190] sm:$0xff]
    %v727 = vld [vmem:[#allocation8 + $0x198] sm:$0xff]
    %v728 = vld [vmem:[#allocation8 + $0x1a0] sm:$0xff]
    %v729 = vld [vmem:[#allocation8 + $0x1a8] sm:$0xff]
    %v730 = vld [vmem:[#allocation8 + $0x1b0] sm:$0xff]
    %v731 = vld [vmem:[#allocation8 + $0x1b8] sm:$0xff]
    %v732 = vld [vmem:[#allocation8 + $0x1c0] sm:$0xff]
    %v733 = vld [vmem:[#allocation8 + $0x1c8] sm:$0xff]
    %v734 = vld [vmem:[#allocation8 + $0x1d0] sm:$0xff]
    %v735 = vld [vmem:[#allocation8 + $0x1d8] sm:$0xff]
    %v736 = vld [vmem:[#allocation8 + $0x1e0] sm:$0xff]
    %v737 = vld [vmem:[#allocation8 + $0x1e8] sm:$0xff]
    %v738 = vld [vmem:[#allocation8 + $0x1f0] sm:$0xff]
    %v739 = vld [vmem:[#allocation8 + $0x1f8] sm:$0xff]
    %v740 = vld [vmem:[#allocation8 + $0x200] sm:$0xff]
    %v741 = vld [vmem:[#allocation8 + $0x208] sm:$0xff]
    %v742 = vld [vmem:[#allocation8 + $0x210] sm:$0xff]
    %v743 = vld [vmem:[#allocation8 + $0x218] sm:$0xff]
    %v744 = vld [vmem:[#allocation8 + $0x220] sm:$0xff]
    %v745 = vld [vmem:[#allocation8 + $0x228] sm:$0xff]
    %v746 = vld [vmem:[#allocation8 + $0x230] sm:$0xff]
    %v747 = vld [vmem:[#allocation8 + $0x238] sm:$0xff]
    %v748 = vld [vmem:[#allocation8 + $0x240] sm:$0xff]
    %v749 = vld [vmem:[#allocation8 + $0x248] sm:$0xff]
    %v750 = vld [vmem:[#allocation8 + $0x250] sm:$0xff]
    %v751 = vld [vmem:[#allocation8 + $0x258] sm:$0xff]
    %v752 = vld [vmem:[#allocation8 + $0x260] sm:$0xff]
    %v753 = vld [vmem:[#allocation8 + $0x268] sm:$0xff]
    %v754 = vld [vmem:[#allocation8 + $0x270] sm:$0xff]
    %v755 = vld [vmem:[#allocation8 + $0x278] sm:$0xff]
    %v756 = vld [vmem:[#allocation8 + $0x280] sm:$0xff]
    %v757 = vld [vmem:[#allocation8 + $0x288] sm:$0xff]
    %v758 = vld [vmem:[#allocation8 + $0x290] sm:$0xff]
    %v759 = vld [vmem:[#allocation8 + $0x298] sm:$0xff]
    %v760 = vld [vmem:[#allocation8 + $0x2a0] sm:$0xff]
    %v761 = vld [vmem:[#allocation8 + $0x2a8] sm:$0xff]
    %v762 = vld [vmem:[#allocation8 + $0x2b0] sm:$0xff]
    %v763 = vld [vmem:[#allocation8 + $0x2b8] sm:$0xff]
    %v764 = vld [vmem:[#allocation8 + $0x2c0] sm:$0xff]
    %v765 = vld [vmem:[#allocation8 + $0x2c8] sm:$0xff]
    %v766 = vld [vmem:[#allocation8 + $0x2d0] sm:$0xff]
    %v767 = vld [vmem:[#allocation8 + $0x2d8] sm:$0xff]
    %v768 = vld [vmem:[#allocation8 + $0x2e0] sm:$0xff]
    %v769 = vld [vmem:[#allocation8 + $0x2e8] sm:$0xff]
    %v770 = vld [vmem:[#allocation8 + $0x2f0] sm:$0xff]
    %v771 = vld [vmem:[#allocation8 + $0x2f8] sm:$0xff]
    %v772 = vld [vmem:[#allocation8 + $0x300] sm:$0xff]
    %v773 = vld [vmem:[#allocation8 + $0x308] sm:$0xff]
    %v774 = vld [vmem:[#allocation8 + $0x310] sm:$0xff]
    %v775 = vld [vmem:[#allocation8 + $0x318] sm:$0xff]
    %v776 = vld [vmem:[#allocation8 + $0x320] sm:$0xff]
    %v777 = vld [vmem:[#allocation8 + $0x328] sm:$0xff]
    %v778 = vld [vmem:[#allocation8 + $0x330] sm:$0xff]
    %v779 = vld [vmem:[#allocation8 + $0x338] sm:$0xff]
    %v780 = vld [vmem:[#allocation8 + $0x340] sm:$0xff]
    %v781 = vld [vmem:[#allocation8 + $0x348] sm:$0xff]
    %v782 = vld [vmem:[#allocation8 + $0x350] sm:$0xff]
    %v783 = vld [vmem:[#allocation8 + $0x358] sm:$0xff]
    %v784 = vld [vmem:[#allocation8 + $0x360] sm:$0xff]
    %v785 = vld [vmem:[#allocation8 + $0x368] sm:$0xff]
    %v786 = vld [vmem:[#allocation8 + $0x370] sm:$0xff]
    %v787 = vld [vmem:[#allocation8 + $0x378] sm:$0xff]
    %v788 = vld [vmem:[#allocation8 + $0x380] sm:$0xff]
    %v789 = vld [vmem:[#allocation8 + $0x388] sm:$0xff]
    %v790 = vld [vmem:[#allocation8 + $0x390] sm:$0xff]
    %v791 = vld [vmem:[#allocation8 + $0x398] sm:$0xff]
    %v792 = vld [vmem:[#allocation8 + $0x3a0] sm:$0xff]
    %v793 = vld [vmem:[#allocation8 + $0x3a8] sm:$0xff]
    %v794 = vld [vmem:[#allocation8 + $0x3b0] sm:$0xff]
    %v795 = vld [vmem:[#allocation8 + $0x3b8] sm:$0xff]
    %v796 = vld [vmem:[#allocation8 + $0x3c0] sm:$0xff]
    %v797 = vld [vmem:[#allocation8 + $0x3c8] sm:$0xff]
    %v798 = vld [vmem:[#allocation8 + $0x3d0] sm:$0xff]
    %v799 = vld [vmem:[#allocation8 + $0x3d8] sm:$0xff]
    %v800 = vld [vmem:[#allocation8 + $0x3e0] sm:$0xff]
    %v801 = vld [vmem:[#allocation8 + $0x3e8] sm:$0xff]
    %v802 = vld [vmem:[#allocation8 + $0x3f0] sm:$0xff]
    %v803 = vld [vmem:[#allocation8 + $0x3f8] sm:$0xff]
    %v804 = vld [vmem:[#allocation10] sm:$0xf]
    %v806 = vperm.slane %v804, 0
    %v807 = vperm.slane %v804, 1
    %v808 = vperm.slane %v804, 2
    %v809 = vperm.slane %v804, 3
    %v942 = vunpack.c.l.b16 %v676
    %v943 = vunpack.c.h.b16 %v676
    %v944 = vunpack.c.l.b16 %v677
    %v945 = vunpack.c.h.b16 %v677
    %v946 = vunpack.c.l.b16 %v678
    %v947 = vunpack.c.h.b16 %v678
    %v948 = vunpack.c.l.b16 %v679
    %v949 = vunpack.c.h.b16 %v679
    %v950 = vunpack.c.l.b16 %v680
    %v951 = vunpack.c.h.b16 %v680
    %v952 = vunpack.c.l.b16 %v681
    %v953 = vunpack.c.h.b16 %v681
    %v954 = vunpack.c.l.b16 %v682
    %v955 = vunpack.c.h.b16 %v682
    %v956 = vunpack.c.l.b16 %v683
    %v957 = vunpack.c.h.b16 %v683
    %v958 = vunpack.c.l.b16 %v684
    %v959 = vunpack.c.h.b16 %v684
    %v960 = vunpack.c.l.b16 %v685
    %v961 = vunpack.c.h.b16 %v685
    %v962 = vunpack.c.l.b16 %v686
    %v963 = vunpack.c.h.b16 %v686
    %v964 = vunpack.c.l.b16 %v687
    %v965 = vunpack.c.h.b16 %v687
    %v966 = vunpack.c.l.b16 %v688
    %v967 = vunpack.c.h.b16 %v688
    %v968 = vunpack.c.l.b16 %v689
    %v969 = vunpack.c.h.b16 %v689
    %v970 = vunpack.c.l.b16 %v690
    %v971 = vunpack.c.h.b16 %v690
    %v972 = vunpack.c.l.b16 %v691
    %v973 = vunpack.c.h.b16 %v691
    %v974 = vunpack.c.l.b16 %v692
    %v975 = vunpack.c.h.b16 %v692
    %v976 = vunpack.c.l.b16 %v693
    %v977 = vunpack.c.h.b16 %v693
    %v978 = vunpack.c.l.b16 %v694
    %v979 = vunpack.c.h.b16 %v694
    %v980 = vunpack.c.l.b16 %v695
    %v981 = vunpack.c.h.b16 %v695
    %v982 = vunpack.c.l.b16 %v696
    %v983 = vunpack.c.h.b16 %v696
    %v984 = vunpack.c.l.b16 %v697
    %v985 = vunpack.c.h.b16 %v697
    %v986 = vunpack.c.l.b16 %v698
    %v987 = vunpack.c.h.b16 %v698
    %v988 = vunpack.c.l.b16 %v699
    %v989 = vunpack.c.h.b16 %v699
    %v990 = vunpack.c.l.b16 %v700
    %v991 = vunpack.c.h.b16 %v700
    %v992 = vunpack.c.l.b16 %v701
    %v993 = vunpack.c.h.b16 %v701
    %v994 = vunpack.c.l.b16 %v702
    %v995 = vunpack.c.h.b16 %v702
    %v996 = vunpack.c.l.b16 %v703
    %v997 = vunpack.c.h.b16 %v703
    %v998 = vunpack.c.l.b16 %v704
    %v999 = vunpack.c.h.b16 %v704
    %v1000 = vunpack.c.l.b16 %v705
    %v1001 = vunpack.c.h.b16 %v705
    %v1002 = vunpack.c.l.b16 %v706
    %v1003 = vunpack.c.h.b16 %v706
    %v1004 = vunpack.c.l.b16 %v707
    %v1005 = vunpack.c.h.b16 %v707
    %v1006 = vunpack.c.l.b16 %v708
    %v1007 = vunpack.c.h.b16 %v708
    %v1008 = vunpack.c.l.b16 %v709
    %v1009 = vunpack.c.h.b16 %v709
    %v1010 = vunpack.c.l.b16 %v710
    %v1011 = vunpack.c.h.b16 %v710
    %v1012 = vunpack.c.l.b16 %v711
    %v1013 = vunpack.c.h.b16 %v711
    %v1014 = vunpack.c.l.b16 %v712
    %v1015 = vunpack.c.h.b16 %v712
    %v1016 = vunpack.c.l.b16 %v713
    %v1017 = vunpack.c.h.b16 %v713
    %v1018 = vunpack.c.l.b16 %v714
    %v1019 = vunpack.c.h.b16 %v714
    %v1020 = vunpack.c.l.b16 %v715
    %v1021 = vunpack.c.h.b16 %v715
    %v1022 = vunpack.c.l.b16 %v716
    %v1023 = vunpack.c.h.b16 %v716
    %v1024 = vunpack.c.l.b16 %v717
    %v1025 = vunpack.c.h.b16 %v717
    %v1026 = vunpack.c.l.b16 %v718
    %v1027 = vunpack.c.h.b16 %v718
    %v1028 = vunpack.c.l.b16 %v719
    %v1029 = vunpack.c.h.b16 %v719
    %v1030 = vunpack.c.l.b16 %v720
    %v1031 = vunpack.c.h.b16 %v720
    %v1032 = vunpack.c.l.b16 %v721
    %v1033 = vunpack.c.h.b16 %v721
    %v1034 = vunpack.c.l.b16 %v722
    %v1035 = vunpack.c.h.b16 %v722
    %v1036 = vunpack.c.l.b16 %v723
    %v1037 = vunpack.c.h.b16 %v723
    %v1038 = vunpack.c.l.b16 %v724
    %v1039 = vunpack.c.h.b16 %v724
    %v1040 = vunpack.c.l.b16 %v725
    %v1041 = vunpack.c.h.b16 %v725
    %v1042 = vunpack.c.l.b16 %v726
    %v1043 = vunpack.c.h.b16 %v726
    %v1044 = vunpack.c.l.b16 %v727
    %v1045 = vunpack.c.h.b16 %v727
    %v1046 = vunpack.c.l.b16 %v728
    %v1047 = vunpack.c.h.b16 %v728
    %v1048 = vunpack.c.l.b16 %v729
    %v1049 = vunpack.c.h.b16 %v729
    %v1050 = vunpack.c.l.b16 %v730
    %v1051 = vunpack.c.h.b16 %v730
    %v1052 = vunpack.c.l.b16 %v731
    %v1053 = vunpack.c.h.b16 %v731
    %v1054 = vunpack.c.l.b16 %v732
    %v1055 = vunpack.c.h.b16 %v732
    %v1056 = vunpack.c.l.b16 %v733
    %v1057 = vunpack.c.h.b16 %v733
    %v1058 = vunpack.c.l.b16 %v734
    %v1059 = vunpack.c.h.b16 %v734
    %v1060 = vunpack.c.l.b16 %v735
    %v1061 = vunpack.c.h.b16 %v735
    %v1062 = vunpack.c.l.b16 %v736
    %v1063 = vunpack.c.h.b16 %v736
    %v1064 = vunpack.c.l.b16 %v737
    %v1065 = vunpack.c.h.b16 %v737
    %v1066 = vunpack.c.l.b16 %v738
    %v1067 = vunpack.c.h.b16 %v738
    %v1068 = vunpack.c.l.b16 %v739
    %v1069 = vunpack.c.h.b16 %v739
    %v1070 = vunpack.c.l.b16 %v740
    %v1071 = vunpack.c.h.b16 %v740
    %v1072 = vunpack.c.l.b16 %v741
    %v1073 = vunpack.c.h.b16 %v741
    %v1074 = vunpack.c.l.b16 %v742
    %v1075 = vunpack.c.h.b16 %v742
    %v1076 = vunpack.c.l.b16 %v743
    %v1077 = vunpack.c.h.b16 %v743
    %v1078 = vunpack.c.l.b16 %v744
    %v1079 = vunpack.c.h.b16 %v744
    %v1080 = vunpack.c.l.b16 %v745
    %v1081 = vunpack.c.h.b16 %v745
    %v1082 = vunpack.c.l.b16 %v746
    %v1083 = vunpack.c.h.b16 %v746
    %v1084 = vunpack.c.l.b16 %v747
    %v1085 = vunpack.c.h.b16 %v747
    %v1086 = vunpack.c.l.b16 %v748
    %v1087 = vunpack.c.h.b16 %v748
    %v1088 = vunpack.c.l.b16 %v749
    %v1089 = vunpack.c.h.b16 %v749
    %v1090 = vunpack.c.l.b16 %v750
    %v1091 = vunpack.c.h.b16 %v750
    %v1092 = vunpack.c.l.b16 %v751
    %v1093 = vunpack.c.h.b16 %v751
    %v1094 = vunpack.c.l.b16 %v752
    %v1095 = vunpack.c.h.b16 %v752
    %v1096 = vunpack.c.l.b16 %v753
    %v1097 = vunpack.c.h.b16 %v753
    %v1098 = vunpack.c.l.b16 %v754
    %v1099 = vunpack.c.h.b16 %v754
    %v1100 = vunpack.c.l.b16 %v755
    %v1101 = vunpack.c.h.b16 %v755
    %v1102 = vunpack.c.l.b16 %v756
    %v1103 = vunpack.c.h.b16 %v756
    %v1104 = vunpack.c.l.b16 %v757
    %v1105 = vunpack.c.h.b16 %v757
    %v1106 = vunpack.c.l.b16 %v758
    %v1107 = vunpack.c.h.b16 %v758
    %v1108 = vunpack.c.l.b16 %v759
    %v1109 = vunpack.c.h.b16 %v759
    %v1110 = vunpack.c.l.b16 %v760
    %v1111 = vunpack.c.h.b16 %v760
    %v1112 = vunpack.c.l.b16 %v761
    %v1113 = vunpack.c.h.b16 %v761
    %v1114 = vunpack.c.l.b16 %v762
    %v1115 = vunpack.c.h.b16 %v762
    %v1116 = vunpack.c.l.b16 %v763
    %v1117 = vunpack.c.h.b16 %v763
    %v1118 = vunpack.c.l.b16 %v764
    %v1119 = vunpack.c.h.b16 %v764
    %v1120 = vunpack.c.l.b16 %v765
    %v1121 = vunpack.c.h.b16 %v765
    %v1122 = vunpack.c.l.b16 %v766
    %v1123 = vunpack.c.h.b16 %v766
    %v1124 = vunpack.c.l.b16 %v767
    %v1125 = vunpack.c.h.b16 %v767
    %v1126 = vunpack.c.l.b16 %v768
    %v1127 = vunpack.c.h.b16 %v768
    %v1128 = vunpack.c.l.b16 %v769
    %v1129 = vunpack.c.h.b16 %v769
    %v1130 = vunpack.c.l.b16 %v770
    %v1131 = vunpack.c.h.b16 %v770
    %v1132 = vunpack.c.l.b16 %v771
    %v1133 = vunpack.c.h.b16 %v771
    %v1134 = vunpack.c.l.b16 %v772
    %v1135 = vunpack.c.h.b16 %v772
    %v1136 = vunpack.c.l.b16 %v773
    %v1137 = vunpack.c.h.b16 %v773
    %v1138 = vunpack.c.l.b16 %v774
    %v1139 = vunpack.c.h.b16 %v774
    %v1140 = vunpack.c.l.b16 %v775
    %v1141 = vunpack.c.h.b16 %v775
    %v1142 = vunpack.c.l.b16 %v776
    %v1143 = vunpack.c.h.b16 %v776
    %v1144 = vunpack.c.l.b16 %v777
    %v1145 = vunpack.c.h.b16 %v777
    %v1146 = vunpack.c.l.b16 %v778
    %v1147 = vunpack.c.h.b16 %v778
    %v1148 = vunpack.c.l.b16 %v779
    %v1149 = vunpack.c.h.b16 %v779
    %v1150 = vunpack.c.l.b16 %v780
    %v1151 = vunpack.c.h.b16 %v780
    %v1152 = vunpack.c.l.b16 %v781
    %v1153 = vunpack.c.h.b16 %v781
    %v1154 = vunpack.c.l.b16 %v782
    %v1155 = vunpack.c.h.b16 %v782
    %v1156 = vunpack.c.l.b16 %v783
    %v1157 = vunpack.c.h.b16 %v783
    %v1158 = vunpack.c.l.b16 %v784
    %v1159 = vunpack.c.h.b16 %v784
    %v1160 = vunpack.c.l.b16 %v785
    %v1161 = vunpack.c.h.b16 %v785
    %v1162 = vunpack.c.l.b16 %v786
    %v1163 = vunpack.c.h.b16 %v786
    %v1164 = vunpack.c.l.b16 %v787
    %v1165 = vunpack.c.h.b16 %v787
    %v1166 = vunpack.c.l.b16 %v788
    %v1167 = vunpack.c.h.b16 %v788
    %v1168 = vunpack.c.l.b16 %v789
    %v1169 = vunpack.c.h.b16 %v789
    %v1170 = vunpack.c.l.b16 %v790
    %v1171 = vunpack.c.h.b16 %v790
    %v1172 = vunpack.c.l.b16 %v791
    %v1173 = vunpack.c.h.b16 %v791
    %v1174 = vunpack.c.l.b16 %v792
    %v1175 = vunpack.c.h.b16 %v792
    %v1176 = vunpack.c.l.b16 %v793
    %v1177 = vunpack.c.h.b16 %v793
    %v1178 = vunpack.c.l.b16 %v794
    %v1179 = vunpack.c.h.b16 %v794
    %v1180 = vunpack.c.l.b16 %v795
    %v1181 = vunpack.c.h.b16 %v795
    %v1182 = vunpack.c.l.b16 %v796
    %v1183 = vunpack.c.h.b16 %v796
    %v1184 = vunpack.c.l.b16 %v797
    %v1185 = vunpack.c.h.b16 %v797
    %v1186 = vunpack.c.l.b16 %v798
    %v1187 = vunpack.c.h.b16 %v798
    %v1188 = vunpack.c.l.b16 %v799
    %v1189 = vunpack.c.h.b16 %v799
    %v1190 = vunpack.c.l.b16 %v800
    %v1191 = vunpack.c.h.b16 %v800
    %v1192 = vunpack.c.l.b16 %v801
    %v1193 = vunpack.c.h.b16 %v801
    %v1194 = vunpack.c.l.b16 %v802
    %v1195 = vunpack.c.h.b16 %v802
    %v1196 = vunpack.c.l.b16 %v803
    %v1197 = vunpack.c.h.b16 %v803
    %v1198 = vpack.c.b16 %v946, %v942
    %v1199 = vpack.c.b16 %v947, %v943
    %v1200 = vpack.c.b16 %v948, %v944
    %v1201 = vpack.c.b16 %v949, %v945
    %v1202 = vpack.c.b16 %v954, %v950
    %v1203 = vpack.c.b16 %v955, %v951
    %v1204 = vpack.c.b16 %v956, %v952
    %v1205 = vpack.c.b16 %v957, %v953
    %v1206 = vpack.c.b16 %v962, %v958
    %v1207 = vpack.c.b16 %v963, %v959
    %v1208 = vpack.c.b16 %v964, %v960
    %v1209 = vpack.c.b16 %v965, %v961
    %v1210 = vpack.c.b16 %v970, %v966
    %v1211 = vpack.c.b16 %v971, %v967
    %v1212 = vpack.c.b16 %v972, %v968
    %v1213 = vpack.c.b16 %v973, %v969
    %v1214 = vpack.c.b16 %v978, %v974
    %v1215 = vpack.c.b16 %v979, %v975
    %v1216 = vpack.c.b16 %v980, %v976
    %v1217 = vpack.c.b16 %v981, %v977
    %v1218 = vpack.c.b16 %v986, %v982
    %v1219 = vpack.c.b16 %v987, %v983
    %v1220 = vpack.c.b16 %v988, %v984
    %v1221 = vpack.c.b16 %v989, %v985
    %v1222 = vpack.c.b16 %v994, %v990
    %v1223 = vpack.c.b16 %v995, %v991
    %v1224 = vpack.c.b16 %v996, %v992
    %v1225 = vpack.c.b16 %v997, %v993
    %v1226 = vpack.c.b16 %v1002, %v998
    %v1227 = vpack.c.b16 %v1003, %v999
    %v1228 = vpack.c.b16 %v1004, %v1000
    %v1229 = vpack.c.b16 %v1005, %v1001
    %v1230 = vpack.c.b16 %v1010, %v1006
    %v1231 = vpack.c.b16 %v1011, %v1007
    %v1232 = vpack.c.b16 %v1012, %v1008
    %v1233 = vpack.c.b16 %v1013, %v1009
    %v1234 = vpack.c.b16 %v1018, %v1014
    %v1235 = vpack.c.b16 %v1019, %v1015
    %v1236 = vpack.c.b16 %v1020, %v1016
    %v1237 = vpack.c.b16 %v1021, %v1017
    %v1238 = vpack.c.b16 %v1026, %v1022
    %v1239 = vpack.c.b16 %v1027, %v1023
    %v1240 = vpack.c.b16 %v1028, %v1024
    %v1241 = vpack.c.b16 %v1029, %v1025
    %v1242 = vpack.c.b16 %v1034, %v1030
    %v1243 = vpack.c.b16 %v1035, %v1031
    %v1244 = vpack.c.b16 %v1036, %v1032
    %v1245 = vpack.c.b16 %v1037, %v1033
    %v1246 = vpack.c.b16 %v1042, %v1038
    %v1247 = vpack.c.b16 %v1043, %v1039
    %v1248 = vpack.c.b16 %v1044, %v1040
    %v1249 = vpack.c.b16 %v1045, %v1041
    %v1250 = vpack.c.b16 %v1050, %v1046
    %v1251 = vpack.c.b16 %v1051, %v1047
    %v1252 = vpack.c.b16 %v1052, %v1048
    %v1253 = vpack.c.b16 %v1053, %v1049
    %v1254 = vpack.c.b16 %v1058, %v1054
    %v1255 = vpack.c.b16 %v1059, %v1055
    %v1256 = vpack.c.b16 %v1060, %v1056
    %v1257 = vpack.c.b16 %v1061, %v1057
    %v1258 = vpack.c.b16 %v1066, %v1062
    %v1259 = vpack.c.b16 %v1067, %v1063
    %v1260 = vpack.c.b16 %v1068, %v1064
    %v1261 = vpack.c.b16 %v1069, %v1065
    %v1262 = vpack.c.b16 %v1074, %v1070
    %v1263 = vpack.c.b16 %v1075, %v1071
    %v1264 = vpack.c.b16 %v1076, %v1072
    %v1265 = vpack.c.b16 %v1077, %v1073
    %v1266 = vpack.c.b16 %v1082, %v1078
    %v1267 = vpack.c.b16 %v1083, %v1079
    %v1268 = vpack.c.b16 %v1084, %v1080
    %v1269 = vpack.c.b16 %v1085, %v1081
    %v1270 = vpack.c.b16 %v1090, %v1086
    %v1271 = vpack.c.b16 %v1091, %v1087
    %v1272 = vpack.c.b16 %v1092, %v1088
    %v1273 = vpack.c.b16 %v1093, %v1089
    %v1274 = vpack.c.b16 %v1098, %v1094
    %v1275 = vpack.c.b16 %v1099, %v1095
    %v1276 = vpack.c.b16 %v1100, %v1096
    %v1277 = vpack.c.b16 %v1101, %v1097
    %v1278 = vpack.c.b16 %v1106, %v1102
    %v1279 = vpack.c.b16 %v1107, %v1103
    %v1280 = vpack.c.b16 %v1108, %v1104
    %v1281 = vpack.c.b16 %v1109, %v1105
    %v1282 = vpack.c.b16 %v1114, %v1110
    %v1283 = vpack.c.b16 %v1115, %v1111
    %v1284 = vpack.c.b16 %v1116, %v1112
    %v1285 = vpack.c.b16 %v1117, %v1113
    %v1286 = vpack.c.b16 %v1122, %v1118
    %v1287 = vpack.c.b16 %v1123, %v1119
    %v1288 = vpack.c.b16 %v1124, %v1120
    %v1289 = vpack.c.b16 %v1125, %v1121
    %v1290 = vpack.c.b16 %v1130, %v1126
    %v1291 = vpack.c.b16 %v1131, %v1127
    %v1292 = vpack.c.b16 %v1132, %v1128
    %v1293 = vpack.c.b16 %v1133, %v1129
    %v1294 = vpack.c.b16 %v1138, %v1134
    %v1295 = vpack.c.b16 %v1139, %v1135
    %v1296 = vpack.c.b16 %v1140, %v1136
    %v1297 = vpack.c.b16 %v1141, %v1137
    %v1298 = vpack.c.b16 %v1146, %v1142
    %v1299 = vpack.c.b16 %v1147, %v1143
    %v1300 = vpack.c.b16 %v1148, %v1144
    %v1301 = vpack.c.b16 %v1149, %v1145
    %v1302 = vpack.c.b16 %v1154, %v1150
    %v1303 = vpack.c.b16 %v1155, %v1151
    %v1304 = vpack.c.b16 %v1156, %v1152
    %v1305 = vpack.c.b16 %v1157, %v1153
    %v1306 = vpack.c.b16 %v1162, %v1158
    %v1307 = vpack.c.b16 %v1163, %v1159
    %v1308 = vpack.c.b16 %v1164, %v1160
    %v1309 = vpack.c.b16 %v1165, %v1161
    %v1310 = vpack.c.b16 %v1170, %v1166
    %v1311 = vpack.c.b16 %v1171, %v1167
    %v1312 = vpack.c.b16 %v1172, %v1168
    %v1313 = vpack.c.b16 %v1173, %v1169
    %v1314 = vpack.c.b16 %v1178, %v1174
    %v1315 = vpack.c.b16 %v1179, %v1175
    %v1316 = vpack.c.b16 %v1180, %v1176
    %v1317 = vpack.c.b16 %v1181, %v1177
    %v1318 = vpack.c.b16 %v1186, %v1182
    %v1319 = vpack.c.b16 %v1187, %v1183
    %v1320 = vpack.c.b16 %v1188, %v1184
    %v1321 = vpack.c.b16 %v1189, %v1185
    %v1322 = vpack.c.b16 %v1194, %v1190
    %v1323 = vpack.c.b16 %v1195, %v1191
    %v1324 = vpack.c.b16 %v1196, %v1192
    %v1325 = vpack.c.b16 %v1197, %v1193
    %1454 = vmatpush.bf16.msra.mxu0 %v1226
    %1455 = vmatpush.bf16.msra.mxu0 %v1222
    %1456 = vmatpush.bf16.msra.mxu0 %v1218
    %1457 = vmatpush.bf16.msra.mxu0 %v1214
    %1458 = vmatpush.bf16.msra.mxu0 %v1210
    %1459 = vmatpush.bf16.msra.mxu0 %v1206
    %1460 = vmatpush.bf16.msra.mxu0 %v1202
    %1461 = vmatpush.bf16.msra.mxu0 %v1198
    %1462 = vmatmul.bf16.gmra.mxu0 %v672
    %v1463 = vpop.f32.mrf.mxu0
    %v1464 = vadd.f32 %v806, %v1463
    %v1465 = vpop.f32.mrf.mxu0
    %v1466 = vadd.f32 %v806, %v1465
    %1467 = vdwg.mxu0
    %1468 = vmatpush.bf16.msra.mxu0 %v1258
    %1469 = vmatpush.bf16.msra.mxu0 %v1254
    %1470 = vmatpush.bf16.msra.mxu0 %v1250
    %1471 = vmatpush.bf16.msra.mxu0 %v1246
    %1472 = vmatpush.bf16.msra.mxu0 %v1242
    %1473 = vmatpush.bf16.msra.mxu0 %v1238
    %1474 = vmatpush.bf16.msra.mxu0 %v1234
    %1475 = vmatpush.bf16.msra.mxu0 %v1230
    %1476 = vmatmul.bf16.gmra.mxu0 %v673
    %v1477 = vpop.f32.mrf.mxu0
    %v1478 = vadd.f32 %v1464, %v1477
    %v1479 = vpop.f32.mrf.mxu0
    %v1480 = vadd.f32 %v1466, %v1479
    %1481 = vdwg.mxu0
    %1482 = vmatpush.bf16.msra.mxu0 %v1290
    %1483 = vmatpush.bf16.msra.mxu0 %v1286
    %1484 = vmatpush.bf16.msra.mxu0 %v1282
    %1485 = vmatpush.bf16.msra.mxu0 %v1278
    %1486 = vmatpush.bf16.msra.mxu0 %v1274
    %1487 = vmatpush.bf16.msra.mxu0 %v1270
    %1488 = vmatpush.bf16.msra.mxu0 %v1266
    %1489 = vmatpush.bf16.msra.mxu0 %v1262
    %1490 = vmatmul.bf16.gmra.mxu0 %v674
    %v1491 = vpop.f32.mrf.mxu0
    %v1492 = vadd.f32 %v1478, %v1491
    %v1493 = vpop.f32.mrf.mxu0
    %v1494 = vadd.f32 %v1480, %v1493
    %1495 = vdwg.mxu0
    %1496 = vmatpush.bf16.msra.mxu0 %v1322
    %1497 = vmatpush.bf16.msra.mxu0 %v1318
    %1498 = vmatpush.bf16.msra.mxu0 %v1314
    %1499 = vmatpush.bf16.msra.mxu0 %v1310
    %1500 = vmatpush.bf16.msra.mxu0 %v1306
    %1501 = vmatpush.bf16.msra.mxu0 %v1302
    %1502 = vmatpush.bf16.msra.mxu0 %v1298
    %1503 = vmatpush.bf16.msra.mxu0 %v1294
    %1504 = vmatmul.bf16.gmra.mxu0 %v675
    %v1505 = vpop.f32.mrf.mxu0
    %v1506 = vadd.f32 %v1492, %v1505
    %v1507 = vpop.f32.mrf.mxu0
    %v1508 = vadd.f32 %v1494, %v1507
    %1509 = vdwg.mxu0
    %1510 = vmatpush.bf16.msra.mxu0 %v1227
    %1511 = vmatpush.bf16.msra.mxu0 %v1223
    %1512 = vmatpush.bf16.msra.mxu0 %v1219
    %1513 = vmatpush.bf16.msra.mxu0 %v1215
    %1514 = vmatpush.bf16.msra.mxu0 %v1211
    %1515 = vmatpush.bf16.msra.mxu0 %v1207
    %1516 = vmatpush.bf16.msra.mxu0 %v1203
    %1517 = vmatpush.bf16.msra.mxu0 %v1199
    %1518 = vmatmul.bf16.gmra.mxu0 %v672
    %v1519 = vpop.f32.mrf.mxu0
    %v1520 = vadd.f32 %v807, %v1519
    %v1521 = vpop.f32.mrf.mxu0
    %v1522 = vadd.f32 %v807, %v1521
    %1523 = vdwg.mxu0
    %1524 = vmatpush.bf16.msra.mxu0 %v1259
    %1525 = vmatpush.bf16.msra.mxu0 %v1255
    %1526 = vmatpush.bf16.msra.mxu0 %v1251
    %1527 = vmatpush.bf16.msra.mxu0 %v1247
    %1528 = vmatpush.bf16.msra.mxu0 %v1243
    %1529 = vmatpush.bf16.msra.mxu0 %v1239
    %1530 = vmatpush.bf16.msra.mxu0 %v1235
    %1531 = vmatpush.bf16.msra.mxu0 %v1231
    %1532 = vmatmul.bf16.gmra.mxu0 %v673
    %v1533 = vpop.f32.mrf.mxu0
    %v1534 = vadd.f32 %v1520, %v1533
    %v1535 = vpop.f32.mrf.mxu0
    %v1536 = vadd.f32 %v1522, %v1535
    %1537 = vdwg.mxu0
    %1538 = vmatpush.bf16.msra.mxu0 %v1291
    %1539 = vmatpush.bf16.msra.mxu0 %v1287
    %1540 = vmatpush.bf16.msra.mxu0 %v1283
    %1541 = vmatpush.bf16.msra.mxu0 %v1279
    %1542 = vmatpush.bf16.msra.mxu0 %v1275
    %1543 = vmatpush.bf16.msra.mxu0 %v1271
    %1544 = vmatpush.bf16.msra.mxu0 %v1267
    %1545 = vmatpush.bf16.msra.mxu0 %v1263
    %1546 = vmatmul.bf16.gmra.mxu0 %v674
    %v1547 = vpop.f32.mrf.mxu0
    %v1548 = vadd.f32 %v1534, %v1547
    %v1549 = vpop.f32.mrf.mxu0
    %v1550 = vadd.f32 %v1536, %v1549
    %1551 = vdwg.mxu0
    %1552 = vmatpush.bf16.msra.mxu0 %v1323
    %1553 = vmatpush.bf16.msra.mxu0 %v1319
    %1554 = vmatpush.bf16.msra.mxu0 %v1315
    %1555 = vmatpush.bf16.msra.mxu0 %v1311
    %1556 = vmatpush.bf16.msra.mxu0 %v1307
    %1557 = vmatpush.bf16.msra.mxu0 %v1303
    %1558 = vmatpush.bf16.msra.mxu0 %v1299
    %1559 = vmatpush.bf16.msra.mxu0 %v1295
    %1560 = vmatmul.bf16.gmra.mxu0 %v675
    %v1561 = vpop.f32.mrf.mxu0
    %v1562 = vadd.f32 %v1548, %v1561
    %v1563 = vpop.f32.mrf.mxu0
    %v1564 = vadd.f32 %v1550, %v1563
    %1565 = vdwg.mxu0
    %1566 = vmatpush.bf16.msra.mxu0 %v1228
    %1567 = vmatpush.bf16.msra.mxu0 %v1224
    %1568 = vmatpush.bf16.msra.mxu0 %v1220
    %1569 = vmatpush.bf16.msra.mxu0 %v1216
    %1570 = vmatpush.bf16.msra.mxu0 %v1212
    %1571 = vmatpush.bf16.msra.mxu0 %v1208
    %1572 = vmatpush.bf16.msra.mxu0 %v1204
    %1573 = vmatpush.bf16.msra.mxu0 %v1200
    %1574 = vmatmul.bf16.gmra.mxu0 %v672
    %v1575 = vpop.f32.mrf.mxu0
    %v1576 = vadd.f32 %v808, %v1575
    %v1577 = vpop.f32.mrf.mxu0
    %v1578 = vadd.f32 %v808, %v1577
    %1579 = vdwg.mxu0
    %1580 = vmatpush.bf16.msra.mxu0 %v1260
    %1581 = vmatpush.bf16.msra.mxu0 %v1256
    %1582 = vmatpush.bf16.msra.mxu0 %v1252
    %1583 = vmatpush.bf16.msra.mxu0 %v1248
    %1584 = vmatpush.bf16.msra.mxu0 %v1244
    %1585 = vmatpush.bf16.msra.mxu0 %v1240
    %1586 = vmatpush.bf16.msra.mxu0 %v1236
    %1587 = vmatpush.bf16.msra.mxu0 %v1232
    %1588 = vmatmul.bf16.gmra.mxu0 %v673
    %v1589 = vpop.f32.mrf.mxu0
    %v1590 = vadd.f32 %v1576, %v1589
    %v1591 = vpop.f32.mrf.mxu0
    %v1592 = vadd.f32 %v1578, %v1591
    %1593 = vdwg.mxu0
    %1594 = vmatpush.bf16.msra.mxu0 %v1292
    %1595 = vmatpush.bf16.msra.mxu0 %v1288
    %1596 = vmatpush.bf16.msra.mxu0 %v1284
    %1597 = vmatpush.bf16.msra.mxu0 %v1280
    %1598 = vmatpush.bf16.msra.mxu0 %v1276
    %1599 = vmatpush.bf16.msra.mxu0 %v1272
    %1600 = vmatpush.bf16.msra.mxu0 %v1268
    %1601 = vmatpush.bf16.msra.mxu0 %v1264
    %1602 = vmatmul.bf16.gmra.mxu0 %v674
    %v1603 = vpop.f32.mrf.mxu0
    %v1604 = vadd.f32 %v1590, %v1603
    %v1605 = vpop.f32.mrf.mxu0
    %v1606 = vadd.f32 %v1592, %v1605
    %1607 = vdwg.mxu0
    %1608 = vmatpush.bf16.msra.mxu0 %v1324
    %1609 = vmatpush.bf16.msra.mxu0 %v1320
    %1610 = vmatpush.bf16.msra.mxu0 %v1316
    %1611 = vmatpush.bf16.msra.mxu0 %v1312
    %1612 = vmatpush.bf16.msra.mxu0 %v1308
    %1613 = vmatpush.bf16.msra.mxu0 %v1304
    %1614 = vmatpush.bf16.msra.mxu0 %v1300
    %1615 = vmatpush.bf16.msra.mxu0 %v1296
    %1616 = vmatmul.bf16.gmra.mxu0 %v675
    %v1617 = vpop.f32.mrf.mxu0
    %v1618 = vadd.f32 %v1604, %v1617
    %v1619 = vpop.f32.mrf.mxu0
    %v1620 = vadd.f32 %v1606, %v1619
    %1621 = vdwg.mxu0
    %1622 = vmatpush.bf16.msra.mxu0 %v1229
    %1623 = vmatpush.bf16.msra.mxu0 %v1225
    %1624 = vmatpush.bf16.msra.mxu0 %v1221
    %1625 = vmatpush.bf16.msra.mxu0 %v1217
    %1626 = vmatpush.bf16.msra.mxu0 %v1213
    %1627 = vmatpush.bf16.msra.mxu0 %v1209
    %1628 = vmatpush.bf16.msra.mxu0 %v1205
    %1629 = vmatpush.bf16.msra.mxu0 %v1201
    %1630 = vmatmul.bf16.gmra.mxu0 %v672
    %v1631 = vpop.f32.mrf.mxu0
    %v1632 = vadd.f32 %v809, %v1631
    %v1633 = vpop.f32.mrf.mxu0
    %v1634 = vadd.f32 %v809, %v1633
    %1635 = vdwg.mxu0
    %1636 = vmatpush.bf16.msra.mxu0 %v1261
    %1637 = vmatpush.bf16.msra.mxu0 %v1257
    %1638 = vmatpush.bf16.msra.mxu0 %v1253
    %1639 = vmatpush.bf16.msra.mxu0 %v1249
    %1640 = vmatpush.bf16.msra.mxu0 %v1245
    %1641 = vmatpush.bf16.msra.mxu0 %v1241
    %1642 = vmatpush.bf16.msra.mxu0 %v1237
    %1643 = vmatpush.bf16.msra.mxu0 %v1233
    %1644 = vmatmul.bf16.gmra.mxu0 %v673
    %v1645 = vpop.f32.mrf.mxu0
    %v1646 = vadd.f32 %v1632, %v1645
    %v1647 = vpop.f32.mrf.mxu0
    %v1648 = vadd.f32 %v1634, %v1647
    %1649 = vdwg.mxu0
    %1650 = vmatpush.bf16.msra.mxu0 %v1293
    %1651 = vmatpush.bf16.msra.mxu0 %v1289
    %1652 = vmatpush.bf16.msra.mxu0 %v1285
    %1653 = vmatpush.bf16.msra.mxu0 %v1281
    %1654 = vmatpush.bf16.msra.mxu0 %v1277
    %1655 = vmatpush.bf16.msra.mxu0 %v1273
    %1656 = vmatpush.bf16.msra.mxu0 %v1269
    %1657 = vmatpush.bf16.msra.mxu0 %v1265
    %1658 = vmatmul.bf16.gmra.mxu0 %v674
    %v1659 = vpop.f32.mrf.mxu0
    %v1660 = vadd.f32 %v1646, %v1659
    %v1661 = vpop.f32.mrf.mxu0
    %v1662 = vadd.f32 %v1648, %v1661
    %1663 = vdwg.mxu0
    %1664 = vmatpush.bf16.msra.mxu0 %v1325
    %1665 = vmatpush.bf16.msra.mxu0 %v1321
    %1666 = vmatpush.bf16.msra.mxu0 %v1317
    %1667 = vmatpush.bf16.msra.mxu0 %v1313
    %1668 = vmatpush.bf16.msra.mxu0 %v1309
    %1669 = vmatpush.bf16.msra.mxu0 %v1305
    %1670 = vmatpush.bf16.msra.mxu0 %v1301
    %1671 = vmatpush.bf16.msra.mxu0 %v1297
    %1672 = vmatmul.bf16.gmra.mxu0 %v675
    %v1673 = vpop.f32.mrf.mxu0
    %v1674 = vadd.f32 %v1660, %v1673
    %v1675 = vpop.f32.mrf.mxu0
    %v1676 = vadd.f32 %v1662, %v1675
    %1677 = vdwg.mxu0
    %v1678 = vmax.f32 %v1506, 0.0
    %v1679 = vmax.f32 %v1562, 0.0
    %v1680 = vmax.f32 %v1618, 0.0
    %v1681 = vmax.f32 %v1674, 0.0
    %v1682 = vmax.f32 %v1508, 0.0
    %v1683 = vmax.f32 %v1564, 0.0
    %v1684 = vmax.f32 %v1620, 0.0
    %v1685 = vmax.f32 %v1676, 0.0
    %v1686 = vld [vmem:[#allocation11] sm:$0xff]
    %v1687 = vld [vmem:[#allocation11 + $0x8] sm:$0xff]
    %v1688 = vld [vmem:[#allocation11 + $0x10] sm:$0xff]
    %v1689 = vld [vmem:[#allocation11 + $0x18] sm:$0xff]
    %v1690 = vld [vmem:[#allocation11 + $0x20] sm:$0xff]
    %v1691 = vld [vmem:[#allocation11 + $0x28] sm:$0xff]
    %v1692 = vld [vmem:[#allocation11 + $0x30] sm:$0xff]
    %v1693 = vld [vmem:[#allocation11 + $0x38] sm:$0xff]
    %v1694 = vld [vmem:[#allocation11 + $0x40] sm:$0xff]
    %v1695 = vld [vmem:[#allocation11 + $0x48] sm:$0xff]
    %v1696 = vld [vmem:[#allocation11 + $0x50] sm:$0xff]
    %v1697 = vld [vmem:[#allocation11 + $0x58] sm:$0xff]
    %v1698 = vld [vmem:[#allocation11 + $0x60] sm:$0xff]
    %v1699 = vld [vmem:[#allocation11 + $0x68] sm:$0xff]
    %v1700 = vld [vmem:[#allocation11 + $0x70] sm:$0xff]
    %v1701 = vld [vmem:[#allocation11 + $0x78] sm:$0xff]
    %v1702 = vld [vmem:[#allocation11 + $0x80] sm:$0xff]
    %v1703 = vld [vmem:[#allocation11 + $0x88] sm:$0xff]
    %v1704 = vld [vmem:[#allocation11 + $0x90] sm:$0xff]
    %v1705 = vld [vmem:[#allocation11 + $0x98] sm:$0xff]
    %v1706 = vld [vmem:[#allocation11 + $0xa0] sm:$0xff]
    %v1707 = vld [vmem:[#allocation11 + $0xa8] sm:$0xff]
    %v1708 = vld [vmem:[#allocation11 + $0xb0] sm:$0xff]
    %v1709 = vld [vmem:[#allocation11 + $0xb8] sm:$0xff]
    %v1710 = vld [vmem:[#allocation11 + $0xc0] sm:$0xff]
    %v1711 = vld [vmem:[#allocation11 + $0xc8] sm:$0xff]
    %v1712 = vld [vmem:[#allocation11 + $0xd0] sm:$0xff]
    %v1713 = vld [vmem:[#allocation11 + $0xd8] sm:$0xff]
    %v1714 = vld [vmem:[#allocation11 + $0xe0] sm:$0xff]
    %v1715 = vld [vmem:[#allocation11 + $0xe8] sm:$0xff]
    %v1716 = vld [vmem:[#allocation11 + $0xf0] sm:$0xff]
    %v1717 = vld [vmem:[#allocation11 + $0xf8] sm:$0xff]
    %v1718 = vld [vmem:[#allocation11 + $0x100] sm:$0xff]
    %v1719 = vld [vmem:[#allocation11 + $0x108] sm:$0xff]
    %v1720 = vld [vmem:[#allocation11 + $0x110] sm:$0xff]
    %v1721 = vld [vmem:[#allocation11 + $0x118] sm:$0xff]
    %v1722 = vld [vmem:[#allocation11 + $0x120] sm:$0xff]
    %v1723 = vld [vmem:[#allocation11 + $0x128] sm:$0xff]
    %v1724 = vld [vmem:[#allocation11 + $0x130] sm:$0xff]
    %v1725 = vld [vmem:[#allocation11 + $0x138] sm:$0xff]
    %v1726 = vld [vmem:[#allocation11 + $0x140] sm:$0xff]
    %v1727 = vld [vmem:[#allocation11 + $0x148] sm:$0xff]
    %v1728 = vld [vmem:[#allocation11 + $0x150] sm:$0xff]
    %v1729 = vld [vmem:[#allocation11 + $0x158] sm:$0xff]
    %v1730 = vld [vmem:[#allocation11 + $0x160] sm:$0xff]
    %v1731 = vld [vmem:[#allocation11 + $0x168] sm:$0xff]
    %v1732 = vld [vmem:[#allocation11 + $0x170] sm:$0xff]
    %v1733 = vld [vmem:[#allocation11 + $0x178] sm:$0xff]
    %v1734 = vld [vmem:[#allocation11 + $0x180] sm:$0xff]
    %v1735 = vld [vmem:[#allocation11 + $0x188] sm:$0xff]
    %v1736 = vld [vmem:[#allocation11 + $0x190] sm:$0xff]
    %v1737 = vld [vmem:[#allocation11 + $0x198] sm:$0xff]
    %v1738 = vld [vmem:[#allocation11 + $0x1a0] sm:$0xff]
    %v1739 = vld [vmem:[#allocation11 + $0x1a8] sm:$0xff]
    %v1740 = vld [vmem:[#allocation11 + $0x1b0] sm:$0xff]
    %v1741 = vld [vmem:[#allocation11 + $0x1b8] sm:$0xff]
    %v1742 = vld [vmem:[#allocation11 + $0x1c0] sm:$0xff]
    %v1743 = vld [vmem:[#allocation11 + $0x1c8] sm:$0xff]
    %v1744 = vld [vmem:[#allocation11 + $0x1d0] sm:$0xff]
    %v1745 = vld [vmem:[#allocation11 + $0x1d8] sm:$0xff]
    %v1746 = vld [vmem:[#allocation11 + $0x1e0] sm:$0xff]
    %v1747 = vld [vmem:[#allocation11 + $0x1e8] sm:$0xff]
    %v1748 = vld [vmem:[#allocation11 + $0x1f0] sm:$0xff]
    %v1749 = vld [vmem:[#allocation11 + $0x1f8] sm:$0xff]
    %v1750 = vld [vmem:[%s6] sm:$0x1]
    %v1752 = vperm.slane %v1750, 0
    %1754 = vmatpush.msra.mxu0 %v1701
    %1755 = vmatpush.msra.mxu0 %v1700
    %1756 = vmatpush.msra.mxu0 %v1699
    %1757 = vmatpush.msra.mxu0 %v1698
    %1758 = vmatpush.msra.mxu0 %v1697
    %1759 = vmatpush.msra.mxu0 %v1696
    %1760 = vmatpush.msra.mxu0 %v1695
    %1761 = vmatpush.msra.mxu0 %v1694
    %1762 = vmatpush.msra.mxu0 %v1693
    %1763 = vmatpush.msra.mxu0 %v1692
    %1764 = vmatpush.msra.mxu0 %v1691
    %1765 = vmatpush.msra.mxu0 %v1690
    %1766 = vmatpush.msra.mxu0 %v1689
    %1767 = vmatpush.msra.mxu0 %v1688
    %1768 = vmatpush.msra.mxu0 %v1687
    %1769 = vmatpush.msra.mxu0 %v1686
    %1770 = vmatmul.f32.gmra.mxu0 %v1678
    %v1771 = vpop.f32.mrf.mxu0
    %v1772 = vadd.f32 %v1752, %v1771
    %1773 = vmatmul.f32.gmra.mxu0 %v1682
    %v1774 = vpop.f32.mrf.mxu0
    %v1775 = vadd.f32 %v1752, %v1774
    %1776 = vdwg.mxu0
    %1777 = vmatpush.msra.mxu0 %v1717
    %1778 = vmatpush.msra.mxu0 %v1716
    %1779 = vmatpush.msra.mxu0 %v1715
    %1780 = vmatpush.msra.mxu0 %v1714
    %1781 = vmatpush.msra.mxu0 %v1713
    %1782 = vmatpush.msra.mxu0 %v1712
    %1783 = vmatpush.msra.mxu0 %v1711
    %1784 = vmatpush.msra.mxu0 %v1710
    %1785 = vmatpush.msra.mxu0 %v1709
    %1786 = vmatpush.msra.mxu0 %v1708
    %1787 = vmatpush.msra.mxu0 %v1707
    %1788 = vmatpush.msra.mxu0 %v1706
    %1789 = vmatpush.msra.mxu0 %v1705
    %1790 = vmatpush.msra.mxu0 %v1704
    %1791 = vmatpush.msra.mxu0 %v1703
    %1792 = vmatpush.msra.mxu0 %v1702
    %1793 = vmatmul.f32.gmra.mxu0 %v1679
    %v1794 = vpop.f32.mrf.mxu0
    %v1795 = vadd.f32 %v1772, %v1794
    %1796 = vmatmul.f32.gmra.mxu0 %v1683
    %v1797 = vpop.f32.mrf.mxu0
    %v1798 = vadd.f32 %v1775, %v1797
    %1799 = vdwg.mxu0
    %1800 = vmatpush.msra.mxu0 %v1733
    %1801 = vmatpush.msra.mxu0 %v1732
    %1802 = vmatpush.msra.mxu0 %v1731
    %1803 = vmatpush.msra.mxu0 %v1730
    %1804 = vmatpush.msra.mxu0 %v1729
    %1805 = vmatpush.msra.mxu0 %v1728
    %1806 = vmatpush.msra.mxu0 %v1727
    %1807 = vmatpush.msra.mxu0 %v1726
    %1808 = vmatpush.msra.mxu0 %v1725
    %1809 = vmatpush.msra.mxu0 %v1724
    %1810 = vmatpush.msra.mxu0 %v1723
    %1811 = vmatpush.msra.mxu0 %v1722
    %1812 = vmatpush.msra.mxu0 %v1721
    %1813 = vmatpush.msra.mxu0 %v1720
    %1814 = vmatpush.msra.mxu0 %v1719
    %1815 = vmatpush.msra.mxu0 %v1718
    %1816 = vmatmul.f32.gmra.mxu0 %v1680
    %v1817 = vpop.f32.mrf.mxu0
    %v1818 = vadd.f32 %v1795, %v1817
    %1819 = vmatmul.f32.gmra.mxu0 %v1684
    %v1820 = vpop.f32.mrf.mxu0
    %v1821 = vadd.f32 %v1798, %v1820
    %1822 = vdwg.mxu0
    %1823 = vmatpush.msra.mxu0 %v1749
    %1824 = vmatpush.msra.mxu0 %v1748
    %1825 = vmatpush.msra.mxu0 %v1747
    %1826 = vmatpush.msra.mxu0 %v1746
    %1827 = vmatpush.msra.mxu0 %v1745
    %1828 = vmatpush.msra.mxu0 %v1744
    %1829 = vmatpush.msra.mxu0 %v1743
    %1830 = vmatpush.msra.mxu0 %v1742
    %1831 = vmatpush.msra.mxu0 %v1741
    %1832 = vmatpush.msra.mxu0 %v1740
    %1833 = vmatpush.msra.mxu0 %v1739
    %1834 = vmatpush.msra.mxu0 %v1738
    %1835 = vmatpush.msra.mxu0 %v1737
    %1836 = vmatpush.msra.mxu0 %v1736
    %1837 = vmatpush.msra.mxu0 %v1735
    %1838 = vmatpush.msra.mxu0 %v1734
    %1839 = vmatmul.f32.gmra.mxu0 %v1681
    %v1840 = vpop.f32.mrf.mxu0
    %v1841 = vadd.f32 %v1818, %v1840
    %1842 = vmatmul.f32.gmra.mxu0 %v1685
    %v1843 = vpop.f32.mrf.mxu0
    %v1844 = vadd.f32 %v1821, %v1843
    %1845 = vdwg.mxu0
    %1846 = vst [vmem:[#allocation13] sm:$0xff] %v1841
    %1847 = vst [vmem:[#allocation13 + $0x8] sm:$0xff] %v1844
    // Predicated region
    $region54: #{tpu_custom_call.1} parent=1 // pred_check
      _
    $region55: #{tpu_custom_call.1} parent=1 // pred_check_branch
      %1849 = sbr.rel (0) target = $region57
    $region56: #{tpu_custom_call.1} parent=1 // pred_region
      %1851 = vsyncadd [#allocation4], 224
      %s1852 = sshll.u32 [#allocation13], 4
      %s1853 = int_to_ptr.vmem [resolvable:$true] %s1852
      %s1854 = sshll.u32 %s7, 4
      %s1855 = int_to_ptr.hbm [resolvable:$true] %s1854
      %1860 = dma.vmem_to_hbm [thread:$0]  %s1853, 32, %s1855, [#allocation4], 32, 32, 2
    $region57: #{tpu_custom_call.1} parent=1 // pred_fallthru
      _
    // Predicated region
    $region58: #{tpu_custom_call.1} parent=1 // pred_check
      _
    $region59: #{tpu_custom_call.1} parent=1 // pred_check_branch
      %1862 = sbr.rel (0) target = $region61
    $region60: #{tpu_custom_call.1} parent=1 // pred_region
      %1864 = dma.done [#allocation4], 256
    $region61: #{tpu_custom_call.1} parent=1 // pred_fallthru
      _
    %1865 = vsyncpa [#allocation3], 1
    %1866 = vsyncpa [#allocation6], 1
    %1867 = vsyncpa [#allocation9], 1
    %1868 = vsyncpa [#allocation12], 1
    %1869 = vsyncpa [#allocation4], 1

</llo_original>
